<compile_context>
chip_gen: v7x
topology: tpu7x:2x2x1
jax: 0.10.0
libtpu: 0.0.40
codegen_flags: <defaults>
</compile_context>

<pallas_src>
import math
import functools

import numpy as np
import jax
import jax.numpy as jnp
from jax.experimental import pallas as pl
from jax.experimental.pallas import tpu as pltpu


# Tick sizes in forward-pass column order for time_tick='M', tick_scale=1:
#   (month, week, day, weekday, hour, minute)  -- 'second' embed is inactive.
_ACTIVE_SIZES = (13, 54, 32, 7, 24, 60)
_LANE = 128   # TPU lane width
_MXU = 256    # MXU granularity on v6e/v7x (also a multiple of the 128 on v5e)


def _round_up(a: int, b: int) -> int:
    return ((a + b - 1) // b) * b


# ------------------------------------------------------------------
# Parameter construction (deterministic, mirrors FixedEmbedding.__init__)
# ------------------------------------------------------------------
def fixed_embedding_table(c_in: int, d_model: int) -> np.ndarray:
    w = np.zeros((c_in, d_model), dtype=np.float32)
    position = np.arange(0, c_in, dtype=np.float32)[:, None]
    div_term = np.exp(
        np.arange(0, d_model, 2, dtype=np.float32) * -(math.log(10000.0) / d_model)
    )
    sin = np.sin(position * div_term)
    cos = np.cos(position * div_term)
    w[:, 0::2] = sin
    n_cos = w[:, 1::2].shape[1]
    w[:, 1::2] = cos[:, :n_cos]
    return w


def build_fused_table(d_model: int):
    """Concatenate the 6 sinusoidal tables row-wise.

    Rows padded to a multiple of 256 (MXU K granularity on v6e/v7x); columns
    padded to a multiple of 128 so the kernel's output tile is lane-dense
    (unmasked stores).  Pad rows/cols are zero and contribute nothing.
    """
    tables = [fixed_embedding_table(c, d_model) for c in _ACTIVE_SIZES]
    offsets, off = [], 0
    for c in _ACTIVE_SIZES:
        offsets.append(off)
        off += c
    nrows = _round_up(off, _MXU)            # 190 -> 256
    dm_pad = _round_up(d_model, _LANE)
    fused = np.zeros((nrows, dm_pad), dtype=np.float32)
    fused[:off, :d_model] = np.concatenate(tables, axis=0)
    return fused, tuple(offsets), nrows, dm_pad


# ------------------------------------------------------------------
# Tile sizing: big tiles amortize the ~0.35 us per-grid-step overhead, but the
# double-buffered tiles must fit the default scoped VMEM on every generation
# (v5e: 16 MiB, v6e/v7x: 32 MiB default, 64 MiB physical on v7x).
# ------------------------------------------------------------------
def _choose_tile(n_rows: int, dm_pad: int, nrows: int, requested: int) -> int:
    # Per tile-row VMEM bytes:
    #   idx   : lane-padded to 128 lanes, int32, double-buffered
    #   out   : dm_pad f32, double-buffered
    #   onehot: ~2 temporary slabs of nrows x 4 B
    per_row = 2 * _LANE * 4 + 2 * dm_pad * 4 + 2 * nrows * 4
    budget = 10 * 1024 * 1024   # stays inside v5e's 16 MiB default scoped VMEM
    cap = max(_MXU, (budget // per_row) // _MXU * _MXU)
    tile = max(_MXU, (min(requested, cap) // _MXU) * _MXU)  # MXU-aligned M
    if n_rows <= tile:
        if n_rows > _MXU:
            # Split into >=2 grid steps so both v7x TensorCores get work.
            tile = max(_MXU, _round_up((n_rows + 1) // 2, _MXU))
        else:
            tile = _MXU
    return tile


# ------------------------------------------------------------------
# Pallas kernel
# ------------------------------------------------------------------
def temporal_embed_kernel(idx_ref, table_ref, out_ref, *, offsets, nrows,
                          compute_dtype):
    # idx_ref:   (tile, 6)         int32          (VMEM)
    # table_ref: (nrows, dm_pad)   compute_dtype  (VMEM, resident: constant index_map)
    # out_ref:   (tile, dm_pad)    float32
    tile = idx_ref.shape[0]
    idx = idx_ref[...]                                            # (tile, 6)
    lane = jax.lax.broadcasted_iota(jnp.int32, (tile, nrows), 1)  # row ids of fused table

    # Each feature column hits a disjoint row-range of the fused table (offsets
    # are cumulative), so a boolean OR equals the one-hot SUM for valid inputs.
    # Out-of-range indices give a wrong-but-finite result (same as before).
    hit = lane == (idx[:, 0:1] + offsets[0])
    for k in range(1, len(offsets)):
        hit = jnp.logical_or(hit, lane == (idx[:, k:k + 1] + offsets[k]))

    # Single select/cast to the matmul dtype (no per-column converts).
    onehot = jnp.where(hit, jnp.ones((), compute_dtype), jnp.zeros((), compute_dtype))

    # One MXU matmul per tile: (tile, nrows) x (nrows, dm_pad), f32 accumulate.
    out_ref[...] = jnp.dot(onehot, table_ref[...],
                           preferred_element_type=jnp.float32)


def temporal_embedding(x: jax.Array, d_model: int, *, tile: int = 1024,
                       use_bf16: bool = True) -> jax.Array:
    """x: (B, T, F>=6) integer time features -> (B, T, d_model) float32.

    use_bf16=True casts the one-hot and the fused table to bfloat16 for the
    MXU (0/1 is exact; the sinusoidal table loses ~3 decimal digits, so results
    differ from the f32 reference by ~1e-2 max-abs).
    """
    fused_np, offsets, nrows, dm_pad = build_fused_table(d_model)
    compute_dtype = jnp.bfloat16 if use_bf16 else jnp.float32
    table = jnp.asarray(fused_np, dtype=compute_dtype)  # cast once, outside the kernel

    B, T, _ = x.shape
    n = B * T
    idx = x[:, :, :6].astype(jnp.int32).reshape(n, 6)

    tile = _choose_tile(n, dm_pad, nrows, tile)
    n_pad = _round_up(n, tile)
    if n_pad != n:
        # Padded rows use index 0 (valid); their output is sliced off below.
        idx = jnp.pad(idx, ((0, n_pad - n), (0, 0)))

    kernel = functools.partial(
        temporal_embed_kernel, offsets=offsets, nrows=nrows,
        compute_dtype=compute_dtype,
    )

    out = pl.pallas_call(
        kernel,
        out_shape=jax.ShapeDtypeStruct((n_pad, dm_pad), jnp.float32),
        grid_spec=pltpu.PrefetchScalarGridSpec(
            num_scalar_prefetch=0,
            grid=(n_pad // tile,),
            in_specs=[
                pl.BlockSpec((tile, 6), lambda i: (i, 0)),
                # Constant index_map -> table stays resident, fetched once.
                pl.BlockSpec((nrows, dm_pad), lambda i: (0, 0)),
            ],
            out_specs=pl.BlockSpec((tile, dm_pad), lambda i: (i, 0)),
        ),
        compiler_params=pltpu.CompilerParams(
            dimension_semantics=("parallel",),   # megacore-shardable 1-D grid
        ),
    )(idx, table)

    return out[:n, :d_model].reshape(B, T, d_model)


# ------------------------------------------------------------------
# Pure-JAX reference (same math, plain gathers) for a sanity check
# ------------------------------------------------------------------
def temporal_embedding_ref(x: jax.Array, d_model: int) -> jax.Array:
    tables = [jnp.asarray(fixed_embedding_table(c, d_model)) for c in _ACTIVE_SIZES]
    xi = x[:, :, :6].astype(jnp.int32)
    out = jnp.zeros(x.shape[:2] + (d_model,), jnp.float32)
    for k, tbl in enumerate(tables):
        out = out + tbl[xi[:, :, k]]
    return out


if __name__ == "__main__":
    B, T, d_model = 2, 8, 32
    key = jax.random.PRNGKey(0)
    keys = jax.random.split(key, 6)
    cols = [
        jax.random.randint(keys[i], (B, T, 1), 0, _ACTIVE_SIZES[i], dtype=jnp.int32)
        for i in range(6)
    ]
    x = jnp.concatenate(cols, axis=-1)  # (B, T, 6) int32 time-feature indices

    ref = temporal_embedding_ref(x, d_model)

    # Exact (f32-matmul) path: matches the reference tightly.
    out_f32 = jax.block_until_ready(temporal_embedding(x, d_model, use_bf16=False))
    np.testing.assert_allclose(np.asarray(out_f32), np.asarray(ref),
                               rtol=1e-5, atol=1e-5)

    # Fast (bf16-matmul) path: table rounded to bf16, so tolerance is looser.
    out_bf16 = jax.block_until_ready(temporal_embedding(x, d_model, use_bf16=True))
    np.testing.assert_allclose(np.asarray(out_bf16), np.asarray(ref),
                               rtol=0, atol=5e-2)

    print("KERNEL_OK")
</pallas_src>

<mosaic_0001>
module attributes {stable_mosaic.version = 11 : i64} {
  func.func @temporal_embed_kernel(%arg0: i32, %arg1: memref<256x6xi32, #tpu.memory_space<vmem>>, %arg2: memref<256x128xf32, #tpu.memory_space<vmem>>, %arg3: memref<256x128xf32, #tpu.memory_space<vmem>>) attributes {dimension_semantics = [#tpu.dimension_semantics<parallel>], iteration_bounds = array<i64: 1>, scalar_prefetch = 0 : i64, scratch_operands = 0 : i64, tpu.core_type = #tpu.core_type<tc>, window_params = [{transform_indices = @transform_0, window_bounds = array<i64: 256, 6>}, {pipeline_mode = #tpu.pipeline_mode<synchronous>, transform_indices = @transform_1, window_bounds = array<i64: 256, 128>}, {transform_indices = @transform_2, window_bounds = array<i64: 256, 128>}]} {
    %c0 = arith.constant 0 : index
    %c0_0 = arith.constant 0 : index
    %0 = vector.load %arg1[%c0, %c0_0] : memref<256x6xi32, #tpu.memory_space<vmem>>, vector<256x6xi32>
    %1 = tpu.iota {dimensions = array<i32: 1>} : vector<256x256xi32>
    %2 = vector.extract_strided_slice %0 {offsets = [0, 0], sizes = [256, 1], strides = [1, 1]} : vector<256x6xi32> to vector<256x1xi32>
    %c0_i32 = arith.constant 0 : i32
    %3 = vector.broadcast %c0_i32 : i32 to vector<256x1xi32>
    %4 = arith.addi %2, %3 : vector<256x1xi32>
    %5 = vector.broadcast %4 : vector<256x1xi32> to vector<256x256xi32>
    %6 = arith.cmpi eq, %1, %5 : vector<256x256xi32>
    %7 = vector.extract_strided_slice %0 {offsets = [0, 1], sizes = [256, 1], strides = [1, 1]} : vector<256x6xi32> to vector<256x1xi32>
    %c13_i32 = arith.constant 13 : i32
    %8 = vector.broadcast %c13_i32 : i32 to vector<256x1xi32>
    %9 = arith.addi %7, %8 : vector<256x1xi32>
    %10 = vector.broadcast %9 : vector<256x1xi32> to vector<256x256xi32>
    %11 = arith.cmpi eq, %1, %10 : vector<256x256xi32>
    %12 = arith.ori %6, %11 : vector<256x256xi1>
    %13 = vector.extract_strided_slice %0 {offsets = [0, 2], sizes = [256, 1], strides = [1, 1]} : vector<256x6xi32> to vector<256x1xi32>
    %c67_i32 = arith.constant 67 : i32
    %14 = vector.broadcast %c67_i32 : i32 to vector<256x1xi32>
    %15 = arith.addi %13, %14 : vector<256x1xi32>
    %16 = vector.broadcast %15 : vector<256x1xi32> to vector<256x256xi32>
    %17 = arith.cmpi eq, %1, %16 : vector<256x256xi32>
    %18 = arith.ori %12, %17 : vector<256x256xi1>
    %19 = vector.extract_strided_slice %0 {offsets = [0, 3], sizes = [256, 1], strides = [1, 1]} : vector<256x6xi32> to vector<256x1xi32>
    %c99_i32 = arith.constant 99 : i32
    %20 = vector.broadcast %c99_i32 : i32 to vector<256x1xi32>
    %21 = arith.addi %19, %20 : vector<256x1xi32>
    %22 = vector.broadcast %21 : vector<256x1xi32> to vector<256x256xi32>
    %23 = arith.cmpi eq, %1, %22 : vector<256x256xi32>
    %24 = arith.ori %18, %23 : vector<256x256xi1>
    %25 = vector.extract_strided_slice %0 {offsets = [0, 4], sizes = [256, 1], strides = [1, 1]} : vector<256x6xi32> to vector<256x1xi32>
    %c106_i32 = arith.constant 106 : i32
    %26 = vector.broadcast %c106_i32 : i32 to vector<256x1xi32>
    %27 = arith.addi %25, %26 : vector<256x1xi32>
    %28 = vector.broadcast %27 : vector<256x1xi32> to vector<256x256xi32>
    %29 = arith.cmpi eq, %1, %28 : vector<256x256xi32>
    %30 = arith.ori %24, %29 : vector<256x256xi1>
    %31 = vector.extract_strided_slice %0 {offsets = [0, 5], sizes = [256, 1], strides = [1, 1]} : vector<256x6xi32> to vector<256x1xi32>
    %c130_i32 = arith.constant 130 : i32
    %32 = vector.broadcast %c130_i32 : i32 to vector<256x1xi32>
    %33 = arith.addi %31, %32 : vector<256x1xi32>
    %34 = vector.broadcast %33 : vector<256x1xi32> to vector<256x256xi32>
    %35 = arith.cmpi eq, %1, %34 : vector<256x256xi32>
    %36 = arith.ori %30, %35 : vector<256x256xi1>
    %cst = arith.constant 1.000000e+00 : f32
    %cst_1 = arith.constant 0.000000e+00 : f32
    %37 = vector.broadcast %cst : f32 to vector<256x256xf32>
    %38 = vector.broadcast %cst_1 : f32 to vector<256x256xf32>
    %39 = arith.select %36, %37, %38 : vector<256x256xi1>, vector<256x256xf32>
    %c0_2 = arith.constant 0 : index
    %c0_3 = arith.constant 0 : index
    %40 = vector.load %arg2[%c0_2, %c0_3] : memref<256x128xf32, #tpu.memory_space<vmem>>, vector<256x128xf32>
    %cst_4 = arith.constant dense<0.000000e+00> : vector<256x128xf32>
    %41 = tpu.matmul %39, %40, %cst_4 {dimension_numbers = #tpu.dot_dimension_numbers<[1], [0], [0], [1], [0, 0, 1, 1], [], []>} : vector<256x256xf32>, vector<256x128xf32>, vector<256x128xf32> -> vector<256x128xf32>
    %c0_5 = arith.constant 0 : index
    %c0_6 = arith.constant 0 : index
    %42 = vector.load %arg3[%c0_5, %c0_6] : memref<256x128xf32, #tpu.memory_space<vmem>>, vector<256x128xf32>
    tpu.vector_store %arg3[%c0_5, %c0_6], %41 {strides = array<i32>} : memref<256x128xf32, #tpu.memory_space<vmem>>, vector<256x128xf32>,
    return
  }
  func.func @transform_0(%arg0: i32) -> (i32, i32) {
    %c0_i32 = arith.constant 0 : i32
    %c0_i32_0 = arith.constant 0 : i32
    return %arg0, %c0_i32 : i32, i32
  }
  func.func @transform_1(%arg0: i32) -> (i32, i32) {
    %c0_i32 = arith.constant 0 : i32
    %c0_i32_0 = arith.constant 0 : i32
    %c0_i32_1 = arith.constant 0 : i32
    return %c0_i32, %c0_i32_0 : i32, i32
  }
  func.func @transform_2(%arg0: i32) -> (i32, i32) {
    %c0_i32 = arith.constant 0 : i32
    %c0_i32_0 = arith.constant 0 : i32
    return %arg0, %c0_i32 : i32, i32
  }
}

</mosaic_0001>

<llo_original>
// kernel: tpu_custom_call.1
$region0: #{tpu_custom_call.1}
  #allocation0 [shape = 'u32[]', space=smem, size = 0x4, offset = 0x4, fixed_abs, tag = 'smem constant byte address 0x4 - core index']
  #allocation1 [shape = 'u32[144,128]{1,0:T(1,128)}', space=vmem, size = 0x12000, scoped, tag = 'internal scratch']
  %s0 = inlined_call_operand.vmem [shape: s32[256,6], index: 0, kind: input, shape index: {}]
  %s1 = inlined_call_operand.vmem [shape: f32[256,128], index: 1, kind: input, shape index: {}]
  %s2 = inlined_call_operand.hbm [shape: f32[256,128], index: 2, kind: output, shape index: {}]
  %s3 = sld [smem:[#allocation0]]
  $region18: #{tpu_custom_call.1} parent=0
    _
  %s5 = ssub.s32 1, %s3
  %s6 = scalar_select 0, %s5, %s3
  $region1: #{tpu_custom_call.1} parent=0
    #allocation2 [shape = 'u8[131072]{0}', space=vmem, size = 0x20000, scoped, tag = 'output window, operand 0, single buffered']
    #allocation3 [shape = 's32[1]{0}', space=sflag, size = 0x4, scoped, tag = 'scoped memory for tpu_custom_call.1']
    %7 = vsyncpa [#allocation3], 0
    // Predicated region
    $region2: #{tpu_custom_call.1} parent=1 // pred_check
      _
    $region3: #{tpu_custom_call.1} parent=1 // pred_check_branch
      %9 = sbr.rel (0) target = $region5
    $region4: #{tpu_custom_call.1} parent=1 // pred_region
      _
    $region5: #{tpu_custom_call.1} parent=1 // pred_fallthru
      _
    // Predicated region
    $region6: #{tpu_custom_call.1} parent=1 // pred_check
      _
    $region7: #{tpu_custom_call.1} parent=1 // pred_check_branch
      %11 = sbr.rel (0) target = $region9
    $region8: #{tpu_custom_call.1} parent=1 // pred_region
      _
    $region9: #{tpu_custom_call.1} parent=1 // pred_fallthru
      _
    %v12 = vld [vmem:[%s0] sm:$0xff]
    %v13 = vld [vmem:[%s0 + $0x8] sm:$0xff]
    %v14 = vld [vmem:[%s0 + $0x10] sm:$0xff]
    %v15 = vld [vmem:[%s0 + $0x18] sm:$0xff]
    %v16 = vld [vmem:[%s0 + $0x20] sm:$0xff]
    %v17 = vld [vmem:[%s0 + $0x28] sm:$0xff]
    %v18 = vld [vmem:[%s0 + $0x30] sm:$0xff]
    %v19 = vld [vmem:[%s0 + $0x38] sm:$0xff]
    %v20 = vld [vmem:[%s0 + $0x40] sm:$0xff]
    %v21 = vld [vmem:[%s0 + $0x48] sm:$0xff]
    %v22 = vld [vmem:[%s0 + $0x50] sm:$0xff]
    %v23 = vld [vmem:[%s0 + $0x58] sm:$0xff]
    %v24 = vld [vmem:[%s0 + $0x60] sm:$0xff]
    %v25 = vld [vmem:[%s0 + $0x68] sm:$0xff]
    %v26 = vld [vmem:[%s0 + $0x70] sm:$0xff]
    %v27 = vld [vmem:[%s0 + $0x78] sm:$0xff]
    %v28 = vld [vmem:[%s0 + $0x80] sm:$0xff]
    %v29 = vld [vmem:[%s0 + $0x88] sm:$0xff]
    %v30 = vld [vmem:[%s0 + $0x90] sm:$0xff]
    %v31 = vld [vmem:[%s0 + $0x98] sm:$0xff]
    %v32 = vld [vmem:[%s0 + $0xa0] sm:$0xff]
    %v33 = vld [vmem:[%s0 + $0xa8] sm:$0xff]
    %v34 = vld [vmem:[%s0 + $0xb0] sm:$0xff]
    %v35 = vld [vmem:[%s0 + $0xb8] sm:$0xff]
    %v36 = vld [vmem:[%s0 + $0xc0] sm:$0xff]
    %v37 = vld [vmem:[%s0 + $0xc8] sm:$0xff]
    %v38 = vld [vmem:[%s0 + $0xd0] sm:$0xff]
    %v39 = vld [vmem:[%s0 + $0xd8] sm:$0xff]
    %v40 = vld [vmem:[%s0 + $0xe0] sm:$0xff]
    %v41 = vld [vmem:[%s0 + $0xe8] sm:$0xff]
    %v42 = vld [vmem:[%s0 + $0xf0] sm:$0xff]
    %v43 = vld [vmem:[%s0 + $0xf8] sm:$0xff]
    %v44 = vlaneseq
    %v45 = vand.u32 %v44, 127
    %v46 = vadd.s32 %v45, 128
    %47 = vset.pattern.permute.xlu0 0
    %48 = vperm.xlu0 %47, %v12
    %v49 = vpop.permute.xlu0 %48
    %50 = vset.pattern.permute.xlu0 0
    %51 = vperm.xlu0 %50, %v13
    %v52 = vpop.permute.xlu0 %51
    %53 = vset.pattern.permute.xlu0 0
    %54 = vperm.xlu0 %53, %v14
    %v55 = vpop.permute.xlu0 %54
    %56 = vset.pattern.permute.xlu0 0
    %57 = vperm.xlu0 %56, %v15
    %v58 = vpop.permute.xlu0 %57
    %59 = vset.pattern.permute.xlu0 0
    %60 = vperm.xlu0 %59, %v16
    %v61 = vpop.permute.xlu0 %60
    %62 = vset.pattern.permute.xlu0 0
    %63 = vperm.xlu0 %62, %v17
    %v64 = vpop.permute.xlu0 %63
    %65 = vset.pattern.permute.xlu0 0
    %66 = vperm.xlu0 %65, %v18
    %v67 = vpop.permute.xlu0 %66
    %68 = vset.pattern.permute.xlu0 0
    %69 = vperm.xlu0 %68, %v19
    %v70 = vpop.permute.xlu0 %69
    %71 = vset.pattern.permute.xlu0 0
    %72 = vperm.xlu0 %71, %v20
    %v73 = vpop.permute.xlu0 %72
    %74 = vset.pattern.permute.xlu0 0
    %75 = vperm.xlu0 %74, %v21
    %v76 = vpop.permute.xlu0 %75
    %77 = vset.pattern.permute.xlu0 0
    %78 = vperm.xlu0 %77, %v22
    %v79 = vpop.permute.xlu0 %78
    %80 = vset.pattern.permute.xlu0 0
    %81 = vperm.xlu0 %80, %v23
    %v82 = vpop.permute.xlu0 %81
    %83 = vset.pattern.permute.xlu0 0
    %84 = vperm.xlu0 %83, %v24
    %v85 = vpop.permute.xlu0 %84
    %86 = vset.pattern.permute.xlu0 0
    %87 = vperm.xlu0 %86, %v25
    %v88 = vpop.permute.xlu0 %87
    %89 = vset.pattern.permute.xlu0 0
    %90 = vperm.xlu0 %89, %v26
    %v91 = vpop.permute.xlu0 %90
    %92 = vset.pattern.permute.xlu0 0
    %93 = vperm.xlu0 %92, %v27
    %v94 = vpop.permute.xlu0 %93
    %95 = vset.pattern.permute.xlu0 0
    %96 = vperm.xlu0 %95, %v28
    %v97 = vpop.permute.xlu0 %96
    %98 = vset.pattern.permute.xlu0 0
    %99 = vperm.xlu0 %98, %v29
    %v100 = vpop.permute.xlu0 %99
    %101 = vset.pattern.permute.xlu0 0
    %102 = vperm.xlu0 %101, %v30
    %v103 = vpop.permute.xlu0 %102
    %104 = vset.pattern.permute.xlu0 0
    %105 = vperm.xlu0 %104, %v31
    %v106 = vpop.permute.xlu0 %105
    %107 = vset.pattern.permute.xlu0 0
    %108 = vperm.xlu0 %107, %v32
    %v109 = vpop.permute.xlu0 %108
    %110 = vset.pattern.permute.xlu0 0
    %111 = vperm.xlu0 %110, %v33
    %v112 = vpop.permute.xlu0 %111
    %113 = vset.pattern.permute.xlu0 0
    %114 = vperm.xlu0 %113, %v34
    %v115 = vpop.permute.xlu0 %114
    %116 = vset.pattern.permute.xlu0 0
    %117 = vperm.xlu0 %116, %v35
    %v118 = vpop.permute.xlu0 %117
    %119 = vset.pattern.permute.xlu0 0
    %120 = vperm.xlu0 %119, %v36
    %v121 = vpop.permute.xlu0 %120
    %122 = vset.pattern.permute.xlu0 0
    %123 = vperm.xlu0 %122, %v37
    %v124 = vpop.permute.xlu0 %123
    %125 = vset.pattern.permute.xlu0 0
    %126 = vperm.xlu0 %125, %v38
    %v127 = vpop.permute.xlu0 %126
    %128 = vset.pattern.permute.xlu0 0
    %129 = vperm.xlu0 %128, %v39
    %v130 = vpop.permute.xlu0 %129
    %131 = vset.pattern.permute.xlu0 0
    %132 = vperm.xlu0 %131, %v40
    %v133 = vpop.permute.xlu0 %132
    %134 = vset.pattern.permute.xlu0 0
    %135 = vperm.xlu0 %134, %v41
    %v136 = vpop.permute.xlu0 %135
    %137 = vset.pattern.permute.xlu0 0
    %138 = vperm.xlu0 %137, %v42
    %v139 = vpop.permute.xlu0 %138
    %140 = vset.pattern.permute.xlu0 0
    %141 = vperm.xlu0 %140, %v43
    %v142 = vpop.permute.xlu0 %141
    %vm143 = vcmp.eq.s32.totalorder %v45, %v49
    %vm144 = vcmp.eq.s32.totalorder %v46, %v49
    %vm145 = vcmp.eq.s32.totalorder %v45, %v52
    %vm146 = vcmp.eq.s32.totalorder %v46, %v52
    %vm147 = vcmp.eq.s32.totalorder %v45, %v55
    %vm148 = vcmp.eq.s32.totalorder %v46, %v55
    %vm149 = vcmp.eq.s32.totalorder %v45, %v58
    %vm150 = vcmp.eq.s32.totalorder %v46, %v58
    %vm151 = vcmp.eq.s32.totalorder %v45, %v61
    %vm152 = vcmp.eq.s32.totalorder %v46, %v61
    %vm153 = vcmp.eq.s32.totalorder %v45, %v64
    %vm154 = vcmp.eq.s32.totalorder %v46, %v64
    %vm155 = vcmp.eq.s32.totalorder %v45, %v67
    %vm156 = vcmp.eq.s32.totalorder %v46, %v67
    %vm157 = vcmp.eq.s32.totalorder %v45, %v70
    %vm158 = vcmp.eq.s32.totalorder %v46, %v70
    %vm159 = vcmp.eq.s32.totalorder %v45, %v73
    %vm160 = vcmp.eq.s32.totalorder %v46, %v73
    %vm161 = vcmp.eq.s32.totalorder %v45, %v76
    %vm162 = vcmp.eq.s32.totalorder %v46, %v76
    %vm163 = vcmp.eq.s32.totalorder %v45, %v79
    %vm164 = vcmp.eq.s32.totalorder %v46, %v79
    %vm165 = vcmp.eq.s32.totalorder %v45, %v82
    %vm166 = vcmp.eq.s32.totalorder %v46, %v82
    %vm167 = vcmp.eq.s32.totalorder %v45, %v85
    %vm168 = vcmp.eq.s32.totalorder %v46, %v85
    %vm169 = vcmp.eq.s32.totalorder %v45, %v88
    %vm170 = vcmp.eq.s32.totalorder %v46, %v88
    %vm171 = vcmp.eq.s32.totalorder %v45, %v91
    %vm172 = vcmp.eq.s32.totalorder %v46, %v91
    %vm173 = vcmp.eq.s32.totalorder %v45, %v94
    %vm174 = vcmp.eq.s32.totalorder %v46, %v94
    %vm175 = vcmp.eq.s32.totalorder %v45, %v97
    %vm176 = vcmp.eq.s32.totalorder %v46, %v97
    %vm177 = vcmp.eq.s32.totalorder %v45, %v100
    %vm178 = vcmp.eq.s32.totalorder %v46, %v100
    %vm179 = vcmp.eq.s32.totalorder %v45, %v103
    %vm180 = vcmp.eq.s32.totalorder %v46, %v103
    %vm181 = vcmp.eq.s32.totalorder %v45, %v106
    %vm182 = vcmp.eq.s32.totalorder %v46, %v106
    %vm183 = vcmp.eq.s32.totalorder %v45, %v109
    %vm184 = vcmp.eq.s32.totalorder %v46, %v109
    %vm185 = vcmp.eq.s32.totalorder %v45, %v112
    %vm186 = vcmp.eq.s32.totalorder %v46, %v112
    %vm187 = vcmp.eq.s32.totalorder %v45, %v115
    %vm188 = vcmp.eq.s32.totalorder %v46, %v115
    %vm189 = vcmp.eq.s32.totalorder %v45, %v118
    %vm190 = vcmp.eq.s32.totalorder %v46, %v118
    %vm191 = vcmp.eq.s32.totalorder %v45, %v121
    %vm192 = vcmp.eq.s32.totalorder %v46, %v121
    %vm193 = vcmp.eq.s32.totalorder %v45, %v124
    %vm194 = vcmp.eq.s32.totalorder %v46, %v124
    %vm195 = vcmp.eq.s32.totalorder %v45, %v127
    %vm196 = vcmp.eq.s32.totalorder %v46, %v127
    %vm197 = vcmp.eq.s32.totalorder %v45, %v130
    %vm198 = vcmp.eq.s32.totalorder %v46, %v130
    %vm199 = vcmp.eq.s32.totalorder %v45, %v133
    %vm200 = vcmp.eq.s32.totalorder %v46, %v133
    %vm201 = vcmp.eq.s32.totalorder %v45, %v136
    %vm202 = vcmp.eq.s32.totalorder %v46, %v136
    %vm203 = vcmp.eq.s32.totalorder %v45, %v139
    %vm204 = vcmp.eq.s32.totalorder %v46, %v139
    %vm205 = vcmp.eq.s32.totalorder %v45, %v142
    %vm206 = vcmp.eq.s32.totalorder %v46, %v142
    %v207 = vadd.s32 %v12, 13
    %v208 = vadd.s32 %v13, 13
    %v209 = vadd.s32 %v14, 13
    %v210 = vadd.s32 %v15, 13
    %v211 = vadd.s32 %v16, 13
    %v212 = vadd.s32 %v17, 13
    %v213 = vadd.s32 %v18, 13
    %v214 = vadd.s32 %v19, 13
    %v215 = vadd.s32 %v20, 13
    %v216 = vadd.s32 %v21, 13
    %v217 = vadd.s32 %v22, 13
    %v218 = vadd.s32 %v23, 13
    %v219 = vadd.s32 %v24, 13
    %v220 = vadd.s32 %v25, 13
    %v221 = vadd.s32 %v26, 13
    %v222 = vadd.s32 %v27, 13
    %v223 = vadd.s32 %v28, 13
    %v224 = vadd.s32 %v29, 13
    %v225 = vadd.s32 %v30, 13
    %v226 = vadd.s32 %v31, 13
    %v227 = vadd.s32 %v32, 13
    %v228 = vadd.s32 %v33, 13
    %v229 = vadd.s32 %v34, 13
    %v230 = vadd.s32 %v35, 13
    %v231 = vadd.s32 %v36, 13
    %v232 = vadd.s32 %v37, 13
    %v233 = vadd.s32 %v38, 13
    %v234 = vadd.s32 %v39, 13
    %v235 = vadd.s32 %v40, 13
    %v236 = vadd.s32 %v41, 13
    %v237 = vadd.s32 %v42, 13
    %v238 = vadd.s32 %v43, 13
    %239 = vset.pattern.permute.xlu0 1
    %240 = vperm.xlu0 %239, %v207
    %v241 = vpop.permute.xlu0 %240
    %242 = vset.pattern.permute.xlu0 1
    %243 = vperm.xlu0 %242, %v208
    %v244 = vpop.permute.xlu0 %243
    %245 = vset.pattern.permute.xlu0 1
    %246 = vperm.xlu0 %245, %v209
    %v247 = vpop.permute.xlu0 %246
    %248 = vset.pattern.permute.xlu0 1
    %249 = vperm.xlu0 %248, %v210
    %v250 = vpop.permute.xlu0 %249
    %251 = vset.pattern.permute.xlu0 1
    %252 = vperm.xlu0 %251, %v211
    %v253 = vpop.permute.xlu0 %252
    %254 = vset.pattern.permute.xlu0 1
    %255 = vperm.xlu0 %254, %v212
    %v256 = vpop.permute.xlu0 %255
    %257 = vset.pattern.permute.xlu0 1
    %258 = vperm.xlu0 %257, %v213
    %v259 = vpop.permute.xlu0 %258
    %260 = vset.pattern.permute.xlu0 1
    %261 = vperm.xlu0 %260, %v214
    %v262 = vpop.permute.xlu0 %261
    %263 = vset.pattern.permute.xlu0 1
    %264 = vperm.xlu0 %263, %v215
    %v265 = vpop.permute.xlu0 %264
    %266 = vset.pattern.permute.xlu0 1
    %267 = vperm.xlu0 %266, %v216
    %v268 = vpop.permute.xlu0 %267
    %269 = vset.pattern.permute.xlu0 1
    %270 = vperm.xlu0 %269, %v217
    %v271 = vpop.permute.xlu0 %270
    %272 = vset.pattern.permute.xlu0 1
    %273 = vperm.xlu0 %272, %v218
    %v274 = vpop.permute.xlu0 %273
    %275 = vset.pattern.permute.xlu0 1
    %276 = vperm.xlu0 %275, %v219
    %v277 = vpop.permute.xlu0 %276
    %278 = vset.pattern.permute.xlu0 1
    %279 = vperm.xlu0 %278, %v220
    %v280 = vpop.permute.xlu0 %279
    %281 = vset.pattern.permute.xlu0 1
    %282 = vperm.xlu0 %281, %v221
    %v283 = vpop.permute.xlu0 %282
    %284 = vset.pattern.permute.xlu0 1
    %285 = vperm.xlu0 %284, %v222
    %v286 = vpop.permute.xlu0 %285
    %287 = vset.pattern.permute.xlu0 1
    %288 = vperm.xlu0 %287, %v223
    %v289 = vpop.permute.xlu0 %288
    %290 = vset.pattern.permute.xlu0 1
    %291 = vperm.xlu0 %290, %v224
    %v292 = vpop.permute.xlu0 %291
    %293 = vset.pattern.permute.xlu0 1
    %294 = vperm.xlu0 %293, %v225
    %v295 = vpop.permute.xlu0 %294
    %296 = vset.pattern.permute.xlu0 1
    %297 = vperm.xlu0 %296, %v226
    %v298 = vpop.permute.xlu0 %297
    %299 = vset.pattern.permute.xlu0 1
    %300 = vperm.xlu0 %299, %v227
    %v301 = vpop.permute.xlu0 %300
    %302 = vset.pattern.permute.xlu0 1
    %303 = vperm.xlu0 %302, %v228
    %v304 = vpop.permute.xlu0 %303
    %305 = vset.pattern.permute.xlu0 1
    %306 = vperm.xlu0 %305, %v229
    %v307 = vpop.permute.xlu0 %306
    %308 = vset.pattern.permute.xlu0 1
    %309 = vperm.xlu0 %308, %v230
    %v310 = vpop.permute.xlu0 %309
    %311 = vset.pattern.permute.xlu0 1
    %312 = vperm.xlu0 %311, %v231
    %v313 = vpop.permute.xlu0 %312
    %314 = vset.pattern.permute.xlu0 1
    %315 = vperm.xlu0 %314, %v232
    %v316 = vpop.permute.xlu0 %315
    %317 = vset.pattern.permute.xlu0 1
    %318 = vperm.xlu0 %317, %v233
    %v319 = vpop.permute.xlu0 %318
    %320 = vset.pattern.permute.xlu0 1
    %321 = vperm.xlu0 %320, %v234
    %v322 = vpop.permute.xlu0 %321
    %323 = vset.pattern.permute.xlu0 1
    %324 = vperm.xlu0 %323, %v235
    %v325 = vpop.permute.xlu0 %324
    %326 = vset.pattern.permute.xlu0 1
    %327 = vperm.xlu0 %326, %v236
    %v328 = vpop.permute.xlu0 %327
    %329 = vset.pattern.permute.xlu0 1
    %330 = vperm.xlu0 %329, %v237
    %v331 = vpop.permute.xlu0 %330
    %332 = vset.pattern.permute.xlu0 1
    %333 = vperm.xlu0 %332, %v238
    %v334 = vpop.permute.xlu0 %333
    %vm335 = vcmp.eq.s32.totalorder %v45, %v241
    %vm336 = vcmp.eq.s32.totalorder %v46, %v241
    %vm337 = vcmp.eq.s32.totalorder %v45, %v244
    %vm338 = vcmp.eq.s32.totalorder %v46, %v244
    %vm339 = vcmp.eq.s32.totalorder %v45, %v247
    %vm340 = vcmp.eq.s32.totalorder %v46, %v247
    %vm341 = vcmp.eq.s32.totalorder %v45, %v250
    %vm342 = vcmp.eq.s32.totalorder %v46, %v250
    %vm343 = vcmp.eq.s32.totalorder %v45, %v253
    %vm344 = vcmp.eq.s32.totalorder %v46, %v253
    %vm345 = vcmp.eq.s32.totalorder %v45, %v256
    %vm346 = vcmp.eq.s32.totalorder %v46, %v256
    %vm347 = vcmp.eq.s32.totalorder %v45, %v259
    %vm348 = vcmp.eq.s32.totalorder %v46, %v259
    %vm349 = vcmp.eq.s32.totalorder %v45, %v262
    %vm350 = vcmp.eq.s32.totalorder %v46, %v262
    %vm351 = vcmp.eq.s32.totalorder %v45, %v265
    %vm352 = vcmp.eq.s32.totalorder %v46, %v265
    %vm353 = vcmp.eq.s32.totalorder %v45, %v268
    %vm354 = vcmp.eq.s32.totalorder %v46, %v268
    %vm355 = vcmp.eq.s32.totalorder %v45, %v271
    %vm356 = vcmp.eq.s32.totalorder %v46, %v271
    %vm357 = vcmp.eq.s32.totalorder %v45, %v274
    %vm358 = vcmp.eq.s32.totalorder %v46, %v274
    %vm359 = vcmp.eq.s32.totalorder %v45, %v277
    %vm360 = vcmp.eq.s32.totalorder %v46, %v277
    %vm361 = vcmp.eq.s32.totalorder %v45, %v280
    %vm362 = vcmp.eq.s32.totalorder %v46, %v280
    %vm363 = vcmp.eq.s32.totalorder %v45, %v283
    %vm364 = vcmp.eq.s32.totalorder %v46, %v283
    %vm365 = vcmp.eq.s32.totalorder %v45, %v286
    %vm366 = vcmp.eq.s32.totalorder %v46, %v286
    %vm367 = vcmp.eq.s32.totalorder %v45, %v289
    %vm368 = vcmp.eq.s32.totalorder %v46, %v289
    %vm369 = vcmp.eq.s32.totalorder %v45, %v292
    %vm370 = vcmp.eq.s32.totalorder %v46, %v292
    %vm371 = vcmp.eq.s32.totalorder %v45, %v295
    %vm372 = vcmp.eq.s32.totalorder %v46, %v295
    %vm373 = vcmp.eq.s32.totalorder %v45, %v298
    %vm374 = vcmp.eq.s32.totalorder %v46, %v298
    %vm375 = vcmp.eq.s32.totalorder %v45, %v301
    %vm376 = vcmp.eq.s32.totalorder %v46, %v301
    %vm377 = vcmp.eq.s32.totalorder %v45, %v304
    %vm378 = vcmp.eq.s32.totalorder %v46, %v304
    %vm379 = vcmp.eq.s32.totalorder %v45, %v307
    %vm380 = vcmp.eq.s32.totalorder %v46, %v307
    %vm381 = vcmp.eq.s32.totalorder %v45, %v310
    %vm382 = vcmp.eq.s32.totalorder %v46, %v310
    %vm383 = vcmp.eq.s32.totalorder %v45, %v313
    %vm384 = vcmp.eq.s32.totalorder %v46, %v313
    %vm385 = vcmp.eq.s32.totalorder %v45, %v316
    %vm386 = vcmp.eq.s32.totalorder %v46, %v316
    %vm387 = vcmp.eq.s32.totalorder %v45, %v319
    %vm388 = vcmp.eq.s32.totalorder %v46, %v319
    %vm389 = vcmp.eq.s32.totalorder %v45, %v322
    %vm390 = vcmp.eq.s32.totalorder %v46, %v322
    %vm391 = vcmp.eq.s32.totalorder %v45, %v325
    %vm392 = vcmp.eq.s32.totalorder %v46, %v325
    %vm393 = vcmp.eq.s32.totalorder %v45, %v328
    %vm394 = vcmp.eq.s32.totalorder %v46, %v328
    %vm395 = vcmp.eq.s32.totalorder %v45, %v331
    %vm396 = vcmp.eq.s32.totalorder %v46, %v331
    %vm397 = vcmp.eq.s32.totalorder %v45, %v334
    %vm398 = vcmp.eq.s32.totalorder %v46, %v334
    %vm399 = vmor %vm143, %vm335
    %vm400 = vmor %vm144, %vm336
    %vm401 = vmor %vm145, %vm337
    %vm402 = vmor %vm146, %vm338
    %vm403 = vmor %vm147, %vm339
    %vm404 = vmor %vm148, %vm340
    %vm405 = vmor %vm149, %vm341
    %vm406 = vmor %vm150, %vm342
    %vm407 = vmor %vm151, %vm343
    %vm408 = vmor %vm152, %vm344
    %vm409 = vmor %vm153, %vm345
    %vm410 = vmor %vm154, %vm346
    %vm411 = vmor %vm155, %vm347
    %vm412 = vmor %vm156, %vm348
    %vm413 = vmor %vm157, %vm349
    %vm414 = vmor %vm158, %vm350
    %vm415 = vmor %vm159, %vm351
    %vm416 = vmor %vm160, %vm352
    %vm417 = vmor %vm161, %vm353
    %vm418 = vmor %vm162, %vm354
    %vm419 = vmor %vm163, %vm355
    %vm420 = vmor %vm164, %vm356
    %vm421 = vmor %vm165, %vm357
    %vm422 = vmor %vm166, %vm358
    %vm423 = vmor %vm167, %vm359
    %vm424 = vmor %vm168, %vm360
    %vm425 = vmor %vm169, %vm361
    %vm426 = vmor %vm170, %vm362
    %vm427 = vmor %vm171, %vm363
    %vm428 = vmor %vm172, %vm364
    %vm429 = vmor %vm173, %vm365
    %vm430 = vmor %vm174, %vm366
    %vm431 = vmor %vm175, %vm367
    %vm432 = vmor %vm176, %vm368
    %vm433 = vmor %vm177, %vm369
    %vm434 = vmor %vm178, %vm370
    %vm435 = vmor %vm179, %vm371
    %vm436 = vmor %vm180, %vm372
    %vm437 = vmor %vm181, %vm373
    %vm438 = vmor %vm182, %vm374
    %vm439 = vmor %vm183, %vm375
    %vm440 = vmor %vm184, %vm376
    %vm441 = vmor %vm185, %vm377
    %vm442 = vmor %vm186, %vm378
    %vm443 = vmor %vm187, %vm379
    %vm444 = vmor %vm188, %vm380
    %vm445 = vmor %vm189, %vm381
    %vm446 = vmor %vm190, %vm382
    %vm447 = vmor %vm191, %vm383
    %vm448 = vmor %vm192, %vm384
    %vm449 = vmor %vm193, %vm385
    %vm450 = vmor %vm194, %vm386
    %vm451 = vmor %vm195, %vm387
    %vm452 = vmor %vm196, %vm388
    %vm453 = vmor %vm197, %vm389
    %vm454 = vmor %vm198, %vm390
    %vm455 = vmor %vm199, %vm391
    %vm456 = vmor %vm200, %vm392
    %vm457 = vmor %vm201, %vm393
    %vm458 = vmor %vm202, %vm394
    %vm459 = vmor %vm203, %vm395
    %vm460 = vmor %vm204, %vm396
    %vm461 = vmor %vm205, %vm397
    %vm462 = vmor %vm206, %vm398
    %v463 = vadd.s32 %v12, 67
    %v464 = vadd.s32 %v13, 67
    %v465 = vadd.s32 %v14, 67
    %v466 = vadd.s32 %v15, 67
    %v467 = vadd.s32 %v16, 67
    %v468 = vadd.s32 %v17, 67
    %v469 = vadd.s32 %v18, 67
    %v470 = vadd.s32 %v19, 67
    %v471 = vadd.s32 %v20, 67
    %v472 = vadd.s32 %v21, 67
    %v473 = vadd.s32 %v22, 67
    %v474 = vadd.s32 %v23, 67
    %v475 = vadd.s32 %v24, 67
    %v476 = vadd.s32 %v25, 67
    %v477 = vadd.s32 %v26, 67
    %v478 = vadd.s32 %v27, 67
    %v479 = vadd.s32 %v28, 67
    %v480 = vadd.s32 %v29, 67
    %v481 = vadd.s32 %v30, 67
    %v482 = vadd.s32 %v31, 67
    %v483 = vadd.s32 %v32, 67
    %v484 = vadd.s32 %v33, 67
    %v485 = vadd.s32 %v34, 67
    %v486 = vadd.s32 %v35, 67
    %v487 = vadd.s32 %v36, 67
    %v488 = vadd.s32 %v37, 67
    %v489 = vadd.s32 %v38, 67
    %v490 = vadd.s32 %v39, 67
    %v491 = vadd.s32 %v40, 67
    %v492 = vadd.s32 %v41, 67
    %v493 = vadd.s32 %v42, 67
    %v494 = vadd.s32 %v43, 67
    %495 = vset.pattern.permute.xlu0 2
    %496 = vperm.xlu0 %495, %v463
    %v497 = vpop.permute.xlu0 %496
    %498 = vset.pattern.permute.xlu0 2
    %499 = vperm.xlu0 %498, %v464
    %v500 = vpop.permute.xlu0 %499
    %501 = vset.pattern.permute.xlu0 2
    %502 = vperm.xlu0 %501, %v465
    %v503 = vpop.permute.xlu0 %502
    %504 = vset.pattern.permute.xlu0 2
    %505 = vperm.xlu0 %504, %v466
    %v506 = vpop.permute.xlu0 %505
    %507 = vset.pattern.permute.xlu0 2
    %508 = vperm.xlu0 %507, %v467
    %v509 = vpop.permute.xlu0 %508
    %510 = vset.pattern.permute.xlu0 2
    %511 = vperm.xlu0 %510, %v468
    %v512 = vpop.permute.xlu0 %511
    %513 = vset.pattern.permute.xlu0 2
    %514 = vperm.xlu0 %513, %v469
    %v515 = vpop.permute.xlu0 %514
    %516 = vset.pattern.permute.xlu0 2
    %517 = vperm.xlu0 %516, %v470
    %v518 = vpop.permute.xlu0 %517
    %519 = vset.pattern.permute.xlu0 2
    %520 = vperm.xlu0 %519, %v471
    %v521 = vpop.permute.xlu0 %520
    %522 = vset.pattern.permute.xlu0 2
    %523 = vperm.xlu0 %522, %v472
    %v524 = vpop.permute.xlu0 %523
    %525 = vset.pattern.permute.xlu0 2
    %526 = vperm.xlu0 %525, %v473
    %v527 = vpop.permute.xlu0 %526
    %528 = vset.pattern.permute.xlu0 2
    %529 = vperm.xlu0 %528, %v474
    %v530 = vpop.permute.xlu0 %529
    %531 = vset.pattern.permute.xlu0 2
    %532 = vperm.xlu0 %531, %v475
    %v533 = vpop.permute.xlu0 %532
    %534 = vset.pattern.permute.xlu0 2
    %535 = vperm.xlu0 %534, %v476
    %v536 = vpop.permute.xlu0 %535
    %537 = vset.pattern.permute.xlu0 2
    %538 = vperm.xlu0 %537, %v477
    %v539 = vpop.permute.xlu0 %538
    %540 = vset.pattern.permute.xlu0 2
    %541 = vperm.xlu0 %540, %v478
    %v542 = vpop.permute.xlu0 %541
    %543 = vset.pattern.permute.xlu0 2
    %544 = vperm.xlu0 %543, %v479
    %v545 = vpop.permute.xlu0 %544
    %546 = vset.pattern.permute.xlu0 2
    %547 = vperm.xlu0 %546, %v480
    %v548 = vpop.permute.xlu0 %547
    %549 = vset.pattern.permute.xlu0 2
    %550 = vperm.xlu0 %549, %v481
    %v551 = vpop.permute.xlu0 %550
    %552 = vset.pattern.permute.xlu0 2
    %553 = vperm.xlu0 %552, %v482
    %v554 = vpop.permute.xlu0 %553
    %555 = vset.pattern.permute.xlu0 2
    %556 = vperm.xlu0 %555, %v483
    %v557 = vpop.permute.xlu0 %556
    %558 = vset.pattern.permute.xlu0 2
    %559 = vperm.xlu0 %558, %v484
    %v560 = vpop.permute.xlu0 %559
    %561 = vset.pattern.permute.xlu0 2
    %562 = vperm.xlu0 %561, %v485
    %v563 = vpop.permute.xlu0 %562
    %564 = vset.pattern.permute.xlu0 2
    %565 = vperm.xlu0 %564, %v486
    %v566 = vpop.permute.xlu0 %565
    %567 = vset.pattern.permute.xlu0 2
    %568 = vperm.xlu0 %567, %v487
    %v569 = vpop.permute.xlu0 %568
    %570 = vset.pattern.permute.xlu0 2
    %571 = vperm.xlu0 %570, %v488
    %v572 = vpop.permute.xlu0 %571
    %573 = vset.pattern.permute.xlu0 2
    %574 = vperm.xlu0 %573, %v489
    %v575 = vpop.permute.xlu0 %574
    %576 = vset.pattern.permute.xlu0 2
    %577 = vperm.xlu0 %576, %v490
    %v578 = vpop.permute.xlu0 %577
    %579 = vset.pattern.permute.xlu0 2
    %580 = vperm.xlu0 %579, %v491
    %v581 = vpop.permute.xlu0 %580
    %582 = vset.pattern.permute.xlu0 2
    %583 = vperm.xlu0 %582, %v492
    %v584 = vpop.permute.xlu0 %583
    %585 = vset.pattern.permute.xlu0 2
    %586 = vperm.xlu0 %585, %v493
    %v587 = vpop.permute.xlu0 %586
    %588 = vset.pattern.permute.xlu0 2
    %589 = vperm.xlu0 %588, %v494
    %v590 = vpop.permute.xlu0 %589
    %vm591 = vcmp.eq.s32.totalorder %v45, %v497
    %vm592 = vcmp.eq.s32.totalorder %v46, %v497
    %vm593 = vcmp.eq.s32.totalorder %v45, %v500
    %vm594 = vcmp.eq.s32.totalorder %v46, %v500
    %vm595 = vcmp.eq.s32.totalorder %v45, %v503
    %vm596 = vcmp.eq.s32.totalorder %v46, %v503
    %vm597 = vcmp.eq.s32.totalorder %v45, %v506
    %vm598 = vcmp.eq.s32.totalorder %v46, %v506
    %vm599 = vcmp.eq.s32.totalorder %v45, %v509
    %vm600 = vcmp.eq.s32.totalorder %v46, %v509
    %vm601 = vcmp.eq.s32.totalorder %v45, %v512
    %vm602 = vcmp.eq.s32.totalorder %v46, %v512
    %vm603 = vcmp.eq.s32.totalorder %v45, %v515
    %vm604 = vcmp.eq.s32.totalorder %v46, %v515
    %vm605 = vcmp.eq.s32.totalorder %v45, %v518
    %vm606 = vcmp.eq.s32.totalorder %v46, %v518
    %vm607 = vcmp.eq.s32.totalorder %v45, %v521
    %vm608 = vcmp.eq.s32.totalorder %v46, %v521
    %vm609 = vcmp.eq.s32.totalorder %v45, %v524
    %vm610 = vcmp.eq.s32.totalorder %v46, %v524
    %vm611 = vcmp.eq.s32.totalorder %v45, %v527
    %vm612 = vcmp.eq.s32.totalorder %v46, %v527
    %vm613 = vcmp.eq.s32.totalorder %v45, %v530
    %vm614 = vcmp.eq.s32.totalorder %v46, %v530
    %vm615 = vcmp.eq.s32.totalorder %v45, %v533
    %vm616 = vcmp.eq.s32.totalorder %v46, %v533
    %vm617 = vcmp.eq.s32.totalorder %v45, %v536
    %vm618 = vcmp.eq.s32.totalorder %v46, %v536
    %vm619 = vcmp.eq.s32.totalorder %v45, %v539
    %vm620 = vcmp.eq.s32.totalorder %v46, %v539
    %vm621 = vcmp.eq.s32.totalorder %v45, %v542
    %vm622 = vcmp.eq.s32.totalorder %v46, %v542
    %vm623 = vcmp.eq.s32.totalorder %v45, %v545
    %vm624 = vcmp.eq.s32.totalorder %v46, %v545
    %vm625 = vcmp.eq.s32.totalorder %v45, %v548
    %vm626 = vcmp.eq.s32.totalorder %v46, %v548
    %vm627 = vcmp.eq.s32.totalorder %v45, %v551
    %vm628 = vcmp.eq.s32.totalorder %v46, %v551
    %vm629 = vcmp.eq.s32.totalorder %v45, %v554
    %vm630 = vcmp.eq.s32.totalorder %v46, %v554
    %vm631 = vcmp.eq.s32.totalorder %v45, %v557
    %vm632 = vcmp.eq.s32.totalorder %v46, %v557
    %vm633 = vcmp.eq.s32.totalorder %v45, %v560
    %vm634 = vcmp.eq.s32.totalorder %v46, %v560
    %vm635 = vcmp.eq.s32.totalorder %v45, %v563
    %vm636 = vcmp.eq.s32.totalorder %v46, %v563
    %vm637 = vcmp.eq.s32.totalorder %v45, %v566
    %vm638 = vcmp.eq.s32.totalorder %v46, %v566
    %vm639 = vcmp.eq.s32.totalorder %v45, %v569
    %vm640 = vcmp.eq.s32.totalorder %v46, %v569
    %vm641 = vcmp.eq.s32.totalorder %v45, %v572
    %vm642 = vcmp.eq.s32.totalorder %v46, %v572
    %vm643 = vcmp.eq.s32.totalorder %v45, %v575
    %vm644 = vcmp.eq.s32.totalorder %v46, %v575
    %vm645 = vcmp.eq.s32.totalorder %v45, %v578
    %vm646 = vcmp.eq.s32.totalorder %v46, %v578
    %vm647 = vcmp.eq.s32.totalorder %v45, %v581
    %vm648 = vcmp.eq.s32.totalorder %v46, %v581
    %vm649 = vcmp.eq.s32.totalorder %v45, %v584
    %vm650 = vcmp.eq.s32.totalorder %v46, %v584
    %vm651 = vcmp.eq.s32.totalorder %v45, %v587
    %vm652 = vcmp.eq.s32.totalorder %v46, %v587
    %vm653 = vcmp.eq.s32.totalorder %v45, %v590
    %vm654 = vcmp.eq.s32.totalorder %v46, %v590
    %vm655 = vmor %vm399, %vm591
    %vm656 = vmor %vm400, %vm592
    %vm657 = vmor %vm401, %vm593
    %vm658 = vmor %vm402, %vm594
    %vm659 = vmor %vm403, %vm595
    %vm660 = vmor %vm404, %vm596
    %vm661 = vmor %vm405, %vm597
    %vm662 = vmor %vm406, %vm598
    %vm663 = vmor %vm407, %vm599
    %vm664 = vmor %vm408, %vm600
    %vm665 = vmor %vm409, %vm601
    %vm666 = vmor %vm410, %vm602
    %vm667 = vmor %vm411, %vm603
    %vm668 = vmor %vm412, %vm604
    %vm669 = vmor %vm413, %vm605
    %vm670 = vmor %vm414, %vm606
    %vm671 = vmor %vm415, %vm607
    %vm672 = vmor %vm416, %vm608
    %vm673 = vmor %vm417, %vm609
    %vm674 = vmor %vm418, %vm610
    %vm675 = vmor %vm419, %vm611
    %vm676 = vmor %vm420, %vm612
    %vm677 = vmor %vm421, %vm613
    %vm678 = vmor %vm422, %vm614
    %vm679 = vmor %vm423, %vm615
    %vm680 = vmor %vm424, %vm616
    %vm681 = vmor %vm425, %vm617
    %vm682 = vmor %vm426, %vm618
    %vm683 = vmor %vm427, %vm619
    %vm684 = vmor %vm428, %vm620
    %vm685 = vmor %vm429, %vm621
    %vm686 = vmor %vm430, %vm622
    %vm687 = vmor %vm431, %vm623
    %vm688 = vmor %vm432, %vm624
    %vm689 = vmor %vm433, %vm625
    %vm690 = vmor %vm434, %vm626
    %vm691 = vmor %vm435, %vm627
    %vm692 = vmor %vm436, %vm628
    %vm693 = vmor %vm437, %vm629
    %vm694 = vmor %vm438, %vm630
    %vm695 = vmor %vm439, %vm631
    %vm696 = vmor %vm440, %vm632
    %vm697 = vmor %vm441, %vm633
    %vm698 = vmor %vm442, %vm634
    %vm699 = vmor %vm443, %vm635
    %vm700 = vmor %vm444, %vm636
    %vm701 = vmor %vm445, %vm637
    %vm702 = vmor %vm446, %vm638
    %vm703 = vmor %vm447, %vm639
    %vm704 = vmor %vm448, %vm640
    %vm705 = vmor %vm449, %vm641
    %vm706 = vmor %vm450, %vm642
    %vm707 = vmor %vm451, %vm643
    %vm708 = vmor %vm452, %vm644
    %vm709 = vmor %vm453, %vm645
    %vm710 = vmor %vm454, %vm646
    %vm711 = vmor %vm455, %vm647
    %vm712 = vmor %vm456, %vm648
    %vm713 = vmor %vm457, %vm649
    %vm714 = vmor %vm458, %vm650
    %vm715 = vmor %vm459, %vm651
    %vm716 = vmor %vm460, %vm652
    %vm717 = vmor %vm461, %vm653
    %vm718 = vmor %vm462, %vm654
    %v719 = vadd.s32 %v12, 99
    %v720 = vadd.s32 %v13, 99
    %v721 = vadd.s32 %v14, 99
    %v722 = vadd.s32 %v15, 99
    %v723 = vadd.s32 %v16, 99
    %v724 = vadd.s32 %v17, 99
    %v725 = vadd.s32 %v18, 99
    %v726 = vadd.s32 %v19, 99
    %v727 = vadd.s32 %v20, 99
    %v728 = vadd.s32 %v21, 99
    %v729 = vadd.s32 %v22, 99
    %v730 = vadd.s32 %v23, 99
    %v731 = vadd.s32 %v24, 99
    %v732 = vadd.s32 %v25, 99
    %v733 = vadd.s32 %v26, 99
    %v734 = vadd.s32 %v27, 99
    %v735 = vadd.s32 %v28, 99
    %v736 = vadd.s32 %v29, 99
    %v737 = vadd.s32 %v30, 99
    %v738 = vadd.s32 %v31, 99
    %v739 = vadd.s32 %v32, 99
    %v740 = vadd.s32 %v33, 99
    %v741 = vadd.s32 %v34, 99
    %v742 = vadd.s32 %v35, 99
    %v743 = vadd.s32 %v36, 99
    %v744 = vadd.s32 %v37, 99
    %v745 = vadd.s32 %v38, 99
    %v746 = vadd.s32 %v39, 99
    %v747 = vadd.s32 %v40, 99
    %v748 = vadd.s32 %v41, 99
    %v749 = vadd.s32 %v42, 99
    %v750 = vadd.s32 %v43, 99
    %751 = vset.pattern.permute.xlu0 3
    %752 = vperm.xlu0 %751, %v719
    %v753 = vpop.permute.xlu0 %752
    %754 = vset.pattern.permute.xlu0 3
    %755 = vperm.xlu0 %754, %v720
    %v756 = vpop.permute.xlu0 %755
    %757 = vset.pattern.permute.xlu0 3
    %758 = vperm.xlu0 %757, %v721
    %v759 = vpop.permute.xlu0 %758
    %760 = vset.pattern.permute.xlu0 3
    %761 = vperm.xlu0 %760, %v722
    %v762 = vpop.permute.xlu0 %761
    %763 = vset.pattern.permute.xlu0 3
    %764 = vperm.xlu0 %763, %v723
    %v765 = vpop.permute.xlu0 %764
    %766 = vset.pattern.permute.xlu0 3
    %767 = vperm.xlu0 %766, %v724
    %v768 = vpop.permute.xlu0 %767
    %769 = vset.pattern.permute.xlu0 3
    %770 = vperm.xlu0 %769, %v725
    %v771 = vpop.permute.xlu0 %770
    %772 = vset.pattern.permute.xlu0 3
    %773 = vperm.xlu0 %772, %v726
    %v774 = vpop.permute.xlu0 %773
    %775 = vset.pattern.permute.xlu0 3
    %776 = vperm.xlu0 %775, %v727
    %v777 = vpop.permute.xlu0 %776
    %778 = vset.pattern.permute.xlu0 3
    %779 = vperm.xlu0 %778, %v728
    %v780 = vpop.permute.xlu0 %779
    %781 = vset.pattern.permute.xlu0 3
    %782 = vperm.xlu0 %781, %v729
    %v783 = vpop.permute.xlu0 %782
    %784 = vset.pattern.permute.xlu0 3
    %785 = vperm.xlu0 %784, %v730
    %v786 = vpop.permute.xlu0 %785
    %787 = vset.pattern.permute.xlu0 3
    %788 = vperm.xlu0 %787, %v731
    %v789 = vpop.permute.xlu0 %788
    %790 = vset.pattern.permute.xlu0 3
    %791 = vperm.xlu0 %790, %v732
    %v792 = vpop.permute.xlu0 %791
    %793 = vset.pattern.permute.xlu0 3
    %794 = vperm.xlu0 %793, %v733
    %v795 = vpop.permute.xlu0 %794
    %796 = vset.pattern.permute.xlu0 3
    %797 = vperm.xlu0 %796, %v734
    %v798 = vpop.permute.xlu0 %797
    %799 = vset.pattern.permute.xlu0 3
    %800 = vperm.xlu0 %799, %v735
    %v801 = vpop.permute.xlu0 %800
    %802 = vset.pattern.permute.xlu0 3
    %803 = vperm.xlu0 %802, %v736
    %v804 = vpop.permute.xlu0 %803
    %805 = vset.pattern.permute.xlu0 3
    %806 = vperm.xlu0 %805, %v737
    %v807 = vpop.permute.xlu0 %806
    %808 = vset.pattern.permute.xlu0 3
    %809 = vperm.xlu0 %808, %v738
    %v810 = vpop.permute.xlu0 %809
    %811 = vset.pattern.permute.xlu0 3
    %812 = vperm.xlu0 %811, %v739
    %v813 = vpop.permute.xlu0 %812
    %814 = vset.pattern.permute.xlu0 3
    %815 = vperm.xlu0 %814, %v740
    %v816 = vpop.permute.xlu0 %815
    %817 = vset.pattern.permute.xlu0 3
    %818 = vperm.xlu0 %817, %v741
    %v819 = vpop.permute.xlu0 %818
    %820 = vset.pattern.permute.xlu0 3
    %821 = vperm.xlu0 %820, %v742
    %v822 = vpop.permute.xlu0 %821
    %823 = vset.pattern.permute.xlu0 3
    %824 = vperm.xlu0 %823, %v743
    %v825 = vpop.permute.xlu0 %824
    %826 = vset.pattern.permute.xlu0 3
    %827 = vperm.xlu0 %826, %v744
    %v828 = vpop.permute.xlu0 %827
    %829 = vset.pattern.permute.xlu0 3
    %830 = vperm.xlu0 %829, %v745
    %v831 = vpop.permute.xlu0 %830
    %832 = vset.pattern.permute.xlu0 3
    %833 = vperm.xlu0 %832, %v746
    %v834 = vpop.permute.xlu0 %833
    %835 = vset.pattern.permute.xlu0 3
    %836 = vperm.xlu0 %835, %v747
    %v837 = vpop.permute.xlu0 %836
    %838 = vset.pattern.permute.xlu0 3
    %839 = vperm.xlu0 %838, %v748
    %v840 = vpop.permute.xlu0 %839
    %841 = vset.pattern.permute.xlu0 3
    %842 = vperm.xlu0 %841, %v749
    %v843 = vpop.permute.xlu0 %842
    %844 = vset.pattern.permute.xlu0 3
    %845 = vperm.xlu0 %844, %v750
    %v846 = vpop.permute.xlu0 %845
    %vm847 = vcmp.eq.s32.totalorder %v45, %v753
    %vm848 = vcmp.eq.s32.totalorder %v46, %v753
    %vm849 = vcmp.eq.s32.totalorder %v45, %v756
    %vm850 = vcmp.eq.s32.totalorder %v46, %v756
    %vm851 = vcmp.eq.s32.totalorder %v45, %v759
    %vm852 = vcmp.eq.s32.totalorder %v46, %v759
    %vm853 = vcmp.eq.s32.totalorder %v45, %v762
    %vm854 = vcmp.eq.s32.totalorder %v46, %v762
    %vm855 = vcmp.eq.s32.totalorder %v45, %v765
    %vm856 = vcmp.eq.s32.totalorder %v46, %v765
    %vm857 = vcmp.eq.s32.totalorder %v45, %v768
    %vm858 = vcmp.eq.s32.totalorder %v46, %v768
    %vm859 = vcmp.eq.s32.totalorder %v45, %v771
    %vm860 = vcmp.eq.s32.totalorder %v46, %v771
    %vm861 = vcmp.eq.s32.totalorder %v45, %v774
    %vm862 = vcmp.eq.s32.totalorder %v46, %v774
    %vm863 = vcmp.eq.s32.totalorder %v45, %v777
    %vm864 = vcmp.eq.s32.totalorder %v46, %v777
    %vm865 = vcmp.eq.s32.totalorder %v45, %v780
    %vm866 = vcmp.eq.s32.totalorder %v46, %v780
    %vm867 = vcmp.eq.s32.totalorder %v45, %v783
    %vm868 = vcmp.eq.s32.totalorder %v46, %v783
    %vm869 = vcmp.eq.s32.totalorder %v45, %v786
    %vm870 = vcmp.eq.s32.totalorder %v46, %v786
    %vm871 = vcmp.eq.s32.totalorder %v45, %v789
    %vm872 = vcmp.eq.s32.totalorder %v46, %v789
    %vm873 = vcmp.eq.s32.totalorder %v45, %v792
    %vm874 = vcmp.eq.s32.totalorder %v46, %v792
    %vm875 = vcmp.eq.s32.totalorder %v45, %v795
    %vm876 = vcmp.eq.s32.totalorder %v46, %v795
    %vm877 = vcmp.eq.s32.totalorder %v45, %v798
    %vm878 = vcmp.eq.s32.totalorder %v46, %v798
    %vm879 = vcmp.eq.s32.totalorder %v45, %v801
    %vm880 = vcmp.eq.s32.totalorder %v46, %v801
    %vm881 = vcmp.eq.s32.totalorder %v45, %v804
    %vm882 = vcmp.eq.s32.totalorder %v46, %v804
    %vm883 = vcmp.eq.s32.totalorder %v45, %v807
    %vm884 = vcmp.eq.s32.totalorder %v46, %v807
    %vm885 = vcmp.eq.s32.totalorder %v45, %v810
    %vm886 = vcmp.eq.s32.totalorder %v46, %v810
    %vm887 = vcmp.eq.s32.totalorder %v45, %v813
    %vm888 = vcmp.eq.s32.totalorder %v46, %v813
    %vm889 = vcmp.eq.s32.totalorder %v45, %v816
    %vm890 = vcmp.eq.s32.totalorder %v46, %v816
    %vm891 = vcmp.eq.s32.totalorder %v45, %v819
    %vm892 = vcmp.eq.s32.totalorder %v46, %v819
    %vm893 = vcmp.eq.s32.totalorder %v45, %v822
    %vm894 = vcmp.eq.s32.totalorder %v46, %v822
    %vm895 = vcmp.eq.s32.totalorder %v45, %v825
    %vm896 = vcmp.eq.s32.totalorder %v46, %v825
    %vm897 = vcmp.eq.s32.totalorder %v45, %v828
    %vm898 = vcmp.eq.s32.totalorder %v46, %v828
    %vm899 = vcmp.eq.s32.totalorder %v45, %v831
    %vm900 = vcmp.eq.s32.totalorder %v46, %v831
    %vm901 = vcmp.eq.s32.totalorder %v45, %v834
    %vm902 = vcmp.eq.s32.totalorder %v46, %v834
    %vm903 = vcmp.eq.s32.totalorder %v45, %v837
    %vm904 = vcmp.eq.s32.totalorder %v46, %v837
    %vm905 = vcmp.eq.s32.totalorder %v45, %v840
    %vm906 = vcmp.eq.s32.totalorder %v46, %v840
    %vm907 = vcmp.eq.s32.totalorder %v45, %v843
    %vm908 = vcmp.eq.s32.totalorder %v46, %v843
    %vm909 = vcmp.eq.s32.totalorder %v45, %v846
    %vm910 = vcmp.eq.s32.totalorder %v46, %v846
    %vm911 = vmor %vm655, %vm847
    %vm912 = vmor %vm656, %vm848
    %vm913 = vmor %vm657, %vm849
    %vm914 = vmor %vm658, %vm850
    %vm915 = vmor %vm659, %vm851
    %vm916 = vmor %vm660, %vm852
    %vm917 = vmor %vm661, %vm853
    %vm918 = vmor %vm662, %vm854
    %vm919 = vmor %vm663, %vm855
    %vm920 = vmor %vm664, %vm856
    %vm921 = vmor %vm665, %vm857
    %vm922 = vmor %vm666, %vm858
    %vm923 = vmor %vm667, %vm859
    %vm924 = vmor %vm668, %vm860
    %vm925 = vmor %vm669, %vm861
    %vm926 = vmor %vm670, %vm862
    %vm927 = vmor %vm671, %vm863
    %vm928 = vmor %vm672, %vm864
    %vm929 = vmor %vm673, %vm865
    %vm930 = vmor %vm674, %vm866
    %vm931 = vmor %vm675, %vm867
    %vm932 = vmor %vm676, %vm868
    %vm933 = vmor %vm677, %vm869
    %vm934 = vmor %vm678, %vm870
    %vm935 = vmor %vm679, %vm871
    %vm936 = vmor %vm680, %vm872
    %vm937 = vmor %vm681, %vm873
    %vm938 = vmor %vm682, %vm874
    %vm939 = vmor %vm683, %vm875
    %vm940 = vmor %vm684, %vm876
    %vm941 = vmor %vm685, %vm877
    %vm942 = vmor %vm686, %vm878
    %vm943 = vmor %vm687, %vm879
    %vm944 = vmor %vm688, %vm880
    %vm945 = vmor %vm689, %vm881
    %vm946 = vmor %vm690, %vm882
    %vm947 = vmor %vm691, %vm883
    %vm948 = vmor %vm692, %vm884
    %vm949 = vmor %vm693, %vm885
    %vm950 = vmor %vm694, %vm886
    %vm951 = vmor %vm695, %vm887
    %vm952 = vmor %vm696, %vm888
    %vm953 = vmor %vm697, %vm889
    %vm954 = vmor %vm698, %vm890
    %vm955 = vmor %vm699, %vm891
    %vm956 = vmor %vm700, %vm892
    %vm957 = vmor %vm701, %vm893
    %vm958 = vmor %vm702, %vm894
    %vm959 = vmor %vm703, %vm895
    %vm960 = vmor %vm704, %vm896
    %vm961 = vmor %vm705, %vm897
    %vm962 = vmor %vm706, %vm898
    %vm963 = vmor %vm707, %vm899
    %vm964 = vmor %vm708, %vm900
    %vm965 = vmor %vm709, %vm901
    %vm966 = vmor %vm710, %vm902
    %vm967 = vmor %vm711, %vm903
    %vm968 = vmor %vm712, %vm904
    %vm969 = vmor %vm713, %vm905
    %vm970 = vmor %vm714, %vm906
    %vm971 = vmor %vm715, %vm907
    %vm972 = vmor %vm716, %vm908
    %vm973 = vmor %vm717, %vm909
    %vm974 = vmor %vm718, %vm910
    %v975 = vadd.s32 %v12, 106
    %v976 = vadd.s32 %v13, 106
    %v977 = vadd.s32 %v14, 106
    %v978 = vadd.s32 %v15, 106
    %v979 = vadd.s32 %v16, 106
    %v980 = vadd.s32 %v17, 106
    %v981 = vadd.s32 %v18, 106
    %v982 = vadd.s32 %v19, 106
    %v983 = vadd.s32 %v20, 106
    %v984 = vadd.s32 %v21, 106
    %v985 = vadd.s32 %v22, 106
    %v986 = vadd.s32 %v23, 106
    %v987 = vadd.s32 %v24, 106
    %v988 = vadd.s32 %v25, 106
    %v989 = vadd.s32 %v26, 106
    %v990 = vadd.s32 %v27, 106
    %v991 = vadd.s32 %v28, 106
    %v992 = vadd.s32 %v29, 106
    %v993 = vadd.s32 %v30, 106
    %v994 = vadd.s32 %v31, 106
    %v995 = vadd.s32 %v32, 106
    %v996 = vadd.s32 %v33, 106
    %v997 = vadd.s32 %v34, 106
    %v998 = vadd.s32 %v35, 106
    %v999 = vadd.s32 %v36, 106
    %v1000 = vadd.s32 %v37, 106
    %v1001 = vadd.s32 %v38, 106
    %v1002 = vadd.s32 %v39, 106
    %v1003 = vadd.s32 %v40, 106
    %v1004 = vadd.s32 %v41, 106
    %v1005 = vadd.s32 %v42, 106
    %v1006 = vadd.s32 %v43, 106
    %1007 = vset.pattern.permute.xlu0 4
    %1008 = vperm.xlu0 %1007, %v975
    %v1009 = vpop.permute.xlu0 %1008
    %1010 = vset.pattern.permute.xlu0 4
    %1011 = vperm.xlu0 %1010, %v976
    %v1012 = vpop.permute.xlu0 %1011
    %1013 = vset.pattern.permute.xlu0 4
    %1014 = vperm.xlu0 %1013, %v977
    %v1015 = vpop.permute.xlu0 %1014
    %1016 = vset.pattern.permute.xlu0 4
    %1017 = vperm.xlu0 %1016, %v978
    %v1018 = vpop.permute.xlu0 %1017
    %1019 = vset.pattern.permute.xlu0 4
    %1020 = vperm.xlu0 %1019, %v979
    %v1021 = vpop.permute.xlu0 %1020
    %1022 = vset.pattern.permute.xlu0 4
    %1023 = vperm.xlu0 %1022, %v980
    %v1024 = vpop.permute.xlu0 %1023
    %1025 = vset.pattern.permute.xlu0 4
    %1026 = vperm.xlu0 %1025, %v981
    %v1027 = vpop.permute.xlu0 %1026
    %1028 = vset.pattern.permute.xlu0 4
    %1029 = vperm.xlu0 %1028, %v982
    %v1030 = vpop.permute.xlu0 %1029
    %1031 = vset.pattern.permute.xlu0 4
    %1032 = vperm.xlu0 %1031, %v983
    %v1033 = vpop.permute.xlu0 %1032
    %1034 = vset.pattern.permute.xlu0 4
    %1035 = vperm.xlu0 %1034, %v984
    %v1036 = vpop.permute.xlu0 %1035
    %1037 = vset.pattern.permute.xlu0 4
    %1038 = vperm.xlu0 %1037, %v985
    %v1039 = vpop.permute.xlu0 %1038
    %1040 = vset.pattern.permute.xlu0 4
    %1041 = vperm.xlu0 %1040, %v986
    %v1042 = vpop.permute.xlu0 %1041
    %1043 = vset.pattern.permute.xlu0 4
    %1044 = vperm.xlu0 %1043, %v987
    %v1045 = vpop.permute.xlu0 %1044
    %1046 = vset.pattern.permute.xlu0 4
    %1047 = vperm.xlu0 %1046, %v988
    %v1048 = vpop.permute.xlu0 %1047
    %1049 = vset.pattern.permute.xlu0 4
    %1050 = vperm.xlu0 %1049, %v989
    %v1051 = vpop.permute.xlu0 %1050
    %1052 = vset.pattern.permute.xlu0 4
    %1053 = vperm.xlu0 %1052, %v990
    %v1054 = vpop.permute.xlu0 %1053
    %1055 = vset.pattern.permute.xlu0 4
    %1056 = vperm.xlu0 %1055, %v991
    %v1057 = vpop.permute.xlu0 %1056
    %1058 = vset.pattern.permute.xlu0 4
    %1059 = vperm.xlu0 %1058, %v992
    %v1060 = vpop.permute.xlu0 %1059
    %1061 = vset.pattern.permute.xlu0 4
    %1062 = vperm.xlu0 %1061, %v993
    %v1063 = vpop.permute.xlu0 %1062
    %1064 = vset.pattern.permute.xlu0 4
    %1065 = vperm.xlu0 %1064, %v994
    %v1066 = vpop.permute.xlu0 %1065
    %1067 = vset.pattern.permute.xlu0 4
    %1068 = vperm.xlu0 %1067, %v995
    %v1069 = vpop.permute.xlu0 %1068
    %1070 = vset.pattern.permute.xlu0 4
    %1071 = vperm.xlu0 %1070, %v996
    %v1072 = vpop.permute.xlu0 %1071
    %1073 = vset.pattern.permute.xlu0 4
    %1074 = vperm.xlu0 %1073, %v997
    %v1075 = vpop.permute.xlu0 %1074
    %1076 = vset.pattern.permute.xlu0 4
    %1077 = vperm.xlu0 %1076, %v998
    %v1078 = vpop.permute.xlu0 %1077
    %1079 = vset.pattern.permute.xlu0 4
    %1080 = vperm.xlu0 %1079, %v999
    %v1081 = vpop.permute.xlu0 %1080
    %1082 = vset.pattern.permute.xlu0 4
    %1083 = vperm.xlu0 %1082, %v1000
    %v1084 = vpop.permute.xlu0 %1083
    %1085 = vset.pattern.permute.xlu0 4
    %1086 = vperm.xlu0 %1085, %v1001
    %v1087 = vpop.permute.xlu0 %1086
    %1088 = vset.pattern.permute.xlu0 4
    %1089 = vperm.xlu0 %1088, %v1002
    %v1090 = vpop.permute.xlu0 %1089
    %1091 = vset.pattern.permute.xlu0 4
    %1092 = vperm.xlu0 %1091, %v1003
    %v1093 = vpop.permute.xlu0 %1092
    %1094 = vset.pattern.permute.xlu0 4
    %1095 = vperm.xlu0 %1094, %v1004
    %v1096 = vpop.permute.xlu0 %1095
    %1097 = vset.pattern.permute.xlu0 4
    %1098 = vperm.xlu0 %1097, %v1005
    %v1099 = vpop.permute.xlu0 %1098
    %1100 = vset.pattern.permute.xlu0 4
    %1101 = vperm.xlu0 %1100, %v1006
    %v1102 = vpop.permute.xlu0 %1101
    %vm1103 = vcmp.eq.s32.totalorder %v45, %v1009
    %vm1104 = vcmp.eq.s32.totalorder %v46, %v1009
    %vm1105 = vcmp.eq.s32.totalorder %v45, %v1012
    %vm1106 = vcmp.eq.s32.totalorder %v46, %v1012
    %vm1107 = vcmp.eq.s32.totalorder %v45, %v1015
    %vm1108 = vcmp.eq.s32.totalorder %v46, %v1015
    %vm1109 = vcmp.eq.s32.totalorder %v45, %v1018
    %vm1110 = vcmp.eq.s32.totalorder %v46, %v1018
    %vm1111 = vcmp.eq.s32.totalorder %v45, %v1021
    %vm1112 = vcmp.eq.s32.totalorder %v46, %v1021
    %vm1113 = vcmp.eq.s32.totalorder %v45, %v1024
    %vm1114 = vcmp.eq.s32.totalorder %v46, %v1024
    %vm1115 = vcmp.eq.s32.totalorder %v45, %v1027
    %vm1116 = vcmp.eq.s32.totalorder %v46, %v1027
    %vm1117 = vcmp.eq.s32.totalorder %v45, %v1030
    %vm1118 = vcmp.eq.s32.totalorder %v46, %v1030
    %vm1119 = vcmp.eq.s32.totalorder %v45, %v1033
    %vm1120 = vcmp.eq.s32.totalorder %v46, %v1033
    %vm1121 = vcmp.eq.s32.totalorder %v45, %v1036
    %vm1122 = vcmp.eq.s32.totalorder %v46, %v1036
    %vm1123 = vcmp.eq.s32.totalorder %v45, %v1039
    %vm1124 = vcmp.eq.s32.totalorder %v46, %v1039
    %vm1125 = vcmp.eq.s32.totalorder %v45, %v1042
    %vm1126 = vcmp.eq.s32.totalorder %v46, %v1042
    %vm1127 = vcmp.eq.s32.totalorder %v45, %v1045
    %vm1128 = vcmp.eq.s32.totalorder %v46, %v1045
    %vm1129 = vcmp.eq.s32.totalorder %v45, %v1048
    %vm1130 = vcmp.eq.s32.totalorder %v46, %v1048
    %vm1131 = vcmp.eq.s32.totalorder %v45, %v1051
    %vm1132 = vcmp.eq.s32.totalorder %v46, %v1051
    %vm1133 = vcmp.eq.s32.totalorder %v45, %v1054
    %vm1134 = vcmp.eq.s32.totalorder %v46, %v1054
    %vm1135 = vcmp.eq.s32.totalorder %v45, %v1057
    %vm1136 = vcmp.eq.s32.totalorder %v46, %v1057
    %vm1137 = vcmp.eq.s32.totalorder %v45, %v1060
    %vm1138 = vcmp.eq.s32.totalorder %v46, %v1060
    %vm1139 = vcmp.eq.s32.totalorder %v45, %v1063
    %vm1140 = vcmp.eq.s32.totalorder %v46, %v1063
    %vm1141 = vcmp.eq.s32.totalorder %v45, %v1066
    %vm1142 = vcmp.eq.s32.totalorder %v46, %v1066
    %vm1143 = vcmp.eq.s32.totalorder %v45, %v1069
    %vm1144 = vcmp.eq.s32.totalorder %v46, %v1069
    %vm1145 = vcmp.eq.s32.totalorder %v45, %v1072
    %vm1146 = vcmp.eq.s32.totalorder %v46, %v1072
    %vm1147 = vcmp.eq.s32.totalorder %v45, %v1075
    %vm1148 = vcmp.eq.s32.totalorder %v46, %v1075
    %vm1149 = vcmp.eq.s32.totalorder %v45, %v1078
    %vm1150 = vcmp.eq.s32.totalorder %v46, %v1078
    %vm1151 = vcmp.eq.s32.totalorder %v45, %v1081
    %vm1152 = vcmp.eq.s32.totalorder %v46, %v1081
    %vm1153 = vcmp.eq.s32.totalorder %v45, %v1084
    %vm1154 = vcmp.eq.s32.totalorder %v46, %v1084
    %vm1155 = vcmp.eq.s32.totalorder %v45, %v1087
    %vm1156 = vcmp.eq.s32.totalorder %v46, %v1087
    %vm1157 = vcmp.eq.s32.totalorder %v45, %v1090
    %vm1158 = vcmp.eq.s32.totalorder %v46, %v1090
    %vm1159 = vcmp.eq.s32.totalorder %v45, %v1093
    %vm1160 = vcmp.eq.s32.totalorder %v46, %v1093
    %vm1161 = vcmp.eq.s32.totalorder %v45, %v1096
    %vm1162 = vcmp.eq.s32.totalorder %v46, %v1096
    %vm1163 = vcmp.eq.s32.totalorder %v45, %v1099
    %vm1164 = vcmp.eq.s32.totalorder %v46, %v1099
    %vm1165 = vcmp.eq.s32.totalorder %v45, %v1102
    %vm1166 = vcmp.eq.s32.totalorder %v46, %v1102
    %vm1167 = vmor %vm911, %vm1103
    %vm1168 = vmor %vm912, %vm1104
    %vm1169 = vmor %vm913, %vm1105
    %vm1170 = vmor %vm914, %vm1106
    %vm1171 = vmor %vm915, %vm1107
    %vm1172 = vmor %vm916, %vm1108
    %vm1173 = vmor %vm917, %vm1109
    %vm1174 = vmor %vm918, %vm1110
    %vm1175 = vmor %vm919, %vm1111
    %vm1176 = vmor %vm920, %vm1112
    %vm1177 = vmor %vm921, %vm1113
    %vm1178 = vmor %vm922, %vm1114
    %vm1179 = vmor %vm923, %vm1115
    %vm1180 = vmor %vm924, %vm1116
    %vm1181 = vmor %vm925, %vm1117
    %vm1182 = vmor %vm926, %vm1118
    %vm1183 = vmor %vm927, %vm1119
    %vm1184 = vmor %vm928, %vm1120
    %vm1185 = vmor %vm929, %vm1121
    %vm1186 = vmor %vm930, %vm1122
    %vm1187 = vmor %vm931, %vm1123
    %vm1188 = vmor %vm932, %vm1124
    %vm1189 = vmor %vm933, %vm1125
    %vm1190 = vmor %vm934, %vm1126
    %vm1191 = vmor %vm935, %vm1127
    %vm1192 = vmor %vm936, %vm1128
    %vm1193 = vmor %vm937, %vm1129
    %vm1194 = vmor %vm938, %vm1130
    %vm1195 = vmor %vm939, %vm1131
    %vm1196 = vmor %vm940, %vm1132
    %vm1197 = vmor %vm941, %vm1133
    %vm1198 = vmor %vm942, %vm1134
    %vm1199 = vmor %vm943, %vm1135
    %vm1200 = vmor %vm944, %vm1136
    %vm1201 = vmor %vm945, %vm1137
    %vm1202 = vmor %vm946, %vm1138
    %vm1203 = vmor %vm947, %vm1139
    %vm1204 = vmor %vm948, %vm1140
    %vm1205 = vmor %vm949, %vm1141
    %vm1206 = vmor %vm950, %vm1142
    %vm1207 = vmor %vm951, %vm1143
    %vm1208 = vmor %vm952, %vm1144
    %vm1209 = vmor %vm953, %vm1145
    %vm1210 = vmor %vm954, %vm1146
    %vm1211 = vmor %vm955, %vm1147
    %vm1212 = vmor %vm956, %vm1148
    %vm1213 = vmor %vm957, %vm1149
    %vm1214 = vmor %vm958, %vm1150
    %vm1215 = vmor %vm959, %vm1151
    %vm1216 = vmor %vm960, %vm1152
    %vm1217 = vmor %vm961, %vm1153
    %vm1218 = vmor %vm962, %vm1154
    %vm1219 = vmor %vm963, %vm1155
    %vm1220 = vmor %vm964, %vm1156
    %vm1221 = vmor %vm965, %vm1157
    %vm1222 = vmor %vm966, %vm1158
    %vm1223 = vmor %vm967, %vm1159
    %vm1224 = vmor %vm968, %vm1160
    %vm1225 = vmor %vm969, %vm1161
    %vm1226 = vmor %vm970, %vm1162
    %vm1227 = vmor %vm971, %vm1163
    %vm1228 = vmor %vm972, %vm1164
    %vm1229 = vmor %vm973, %vm1165
    %vm1230 = vmor %vm974, %vm1166
    %v1231 = vadd.s32 %v12, 130
    %v1232 = vadd.s32 %v13, 130
    %v1233 = vadd.s32 %v14, 130
    %v1234 = vadd.s32 %v15, 130
    %v1235 = vadd.s32 %v16, 130
    %v1236 = vadd.s32 %v17, 130
    %v1237 = vadd.s32 %v18, 130
    %v1238 = vadd.s32 %v19, 130
    %v1239 = vadd.s32 %v20, 130
    %v1240 = vadd.s32 %v21, 130
    %v1241 = vadd.s32 %v22, 130
    %v1242 = vadd.s32 %v23, 130
    %v1243 = vadd.s32 %v24, 130
    %v1244 = vadd.s32 %v25, 130
    %v1245 = vadd.s32 %v26, 130
    %v1246 = vadd.s32 %v27, 130
    %v1247 = vadd.s32 %v28, 130
    %v1248 = vadd.s32 %v29, 130
    %v1249 = vadd.s32 %v30, 130
    %v1250 = vadd.s32 %v31, 130
    %v1251 = vadd.s32 %v32, 130
    %v1252 = vadd.s32 %v33, 130
    %v1253 = vadd.s32 %v34, 130
    %v1254 = vadd.s32 %v35, 130
    %v1255 = vadd.s32 %v36, 130
    %v1256 = vadd.s32 %v37, 130
    %v1257 = vadd.s32 %v38, 130
    %v1258 = vadd.s32 %v39, 130
    %v1259 = vadd.s32 %v40, 130
    %v1260 = vadd.s32 %v41, 130
    %v1261 = vadd.s32 %v42, 130
    %v1262 = vadd.s32 %v43, 130
    %1263 = vset.pattern.permute.xlu0 5
    %1264 = vperm.xlu0 %1263, %v1231
    %v1265 = vpop.permute.xlu0 %1264
    %1266 = vset.pattern.permute.xlu0 5
    %1267 = vperm.xlu0 %1266, %v1232
    %v1268 = vpop.permute.xlu0 %1267
    %1269 = vset.pattern.permute.xlu0 5
    %1270 = vperm.xlu0 %1269, %v1233
    %v1271 = vpop.permute.xlu0 %1270
    %1272 = vset.pattern.permute.xlu0 5
    %1273 = vperm.xlu0 %1272, %v1234
    %v1274 = vpop.permute.xlu0 %1273
    %1275 = vset.pattern.permute.xlu0 5
    %1276 = vperm.xlu0 %1275, %v1235
    %v1277 = vpop.permute.xlu0 %1276
    %1278 = vset.pattern.permute.xlu0 5
    %1279 = vperm.xlu0 %1278, %v1236
    %v1280 = vpop.permute.xlu0 %1279
    %1281 = vset.pattern.permute.xlu0 5
    %1282 = vperm.xlu0 %1281, %v1237
    %v1283 = vpop.permute.xlu0 %1282
    %1284 = vset.pattern.permute.xlu0 5
    %1285 = vperm.xlu0 %1284, %v1238
    %v1286 = vpop.permute.xlu0 %1285
    %1287 = vset.pattern.permute.xlu0 5
    %1288 = vperm.xlu0 %1287, %v1239
    %v1289 = vpop.permute.xlu0 %1288
    %1290 = vset.pattern.permute.xlu0 5
    %1291 = vperm.xlu0 %1290, %v1240
    %v1292 = vpop.permute.xlu0 %1291
    %1293 = vset.pattern.permute.xlu0 5
    %1294 = vperm.xlu0 %1293, %v1241
    %v1295 = vpop.permute.xlu0 %1294
    %1296 = vset.pattern.permute.xlu0 5
    %1297 = vperm.xlu0 %1296, %v1242
    %v1298 = vpop.permute.xlu0 %1297
    %1299 = vset.pattern.permute.xlu0 5
    %1300 = vperm.xlu0 %1299, %v1243
    %v1301 = vpop.permute.xlu0 %1300
    %1302 = vset.pattern.permute.xlu0 5
    %1303 = vperm.xlu0 %1302, %v1244
    %v1304 = vpop.permute.xlu0 %1303
    %1305 = vset.pattern.permute.xlu0 5
    %1306 = vperm.xlu0 %1305, %v1245
    %v1307 = vpop.permute.xlu0 %1306
    %1308 = vset.pattern.permute.xlu0 5
    %1309 = vperm.xlu0 %1308, %v1246
    %v1310 = vpop.permute.xlu0 %1309
    %1311 = vset.pattern.permute.xlu0 5
    %1312 = vperm.xlu0 %1311, %v1247
    %v1313 = vpop.permute.xlu0 %1312
    %1314 = vset.pattern.permute.xlu0 5
    %1315 = vperm.xlu0 %1314, %v1248
    %v1316 = vpop.permute.xlu0 %1315
    %1317 = vset.pattern.permute.xlu0 5
    %1318 = vperm.xlu0 %1317, %v1249
    %v1319 = vpop.permute.xlu0 %1318
    %1320 = vset.pattern.permute.xlu0 5
    %1321 = vperm.xlu0 %1320, %v1250
    %v1322 = vpop.permute.xlu0 %1321
    %1323 = vset.pattern.permute.xlu0 5
    %1324 = vperm.xlu0 %1323, %v1251
    %v1325 = vpop.permute.xlu0 %1324
    %1326 = vset.pattern.permute.xlu0 5
    %1327 = vperm.xlu0 %1326, %v1252
    %v1328 = vpop.permute.xlu0 %1327
    %1329 = vset.pattern.permute.xlu0 5
    %1330 = vperm.xlu0 %1329, %v1253
    %v1331 = vpop.permute.xlu0 %1330
    %1332 = vset.pattern.permute.xlu0 5
    %1333 = vperm.xlu0 %1332, %v1254
    %v1334 = vpop.permute.xlu0 %1333
    %1335 = vset.pattern.permute.xlu0 5
    %1336 = vperm.xlu0 %1335, %v1255
    %v1337 = vpop.permute.xlu0 %1336
    %1338 = vset.pattern.permute.xlu0 5
    %1339 = vperm.xlu0 %1338, %v1256
    %v1340 = vpop.permute.xlu0 %1339
    %1341 = vset.pattern.permute.xlu0 5
    %1342 = vperm.xlu0 %1341, %v1257
    %v1343 = vpop.permute.xlu0 %1342
    %1344 = vset.pattern.permute.xlu0 5
    %1345 = vperm.xlu0 %1344, %v1258
    %v1346 = vpop.permute.xlu0 %1345
    %1347 = vset.pattern.permute.xlu0 5
    %1348 = vperm.xlu0 %1347, %v1259
    %v1349 = vpop.permute.xlu0 %1348
    %1350 = vset.pattern.permute.xlu0 5
    %1351 = vperm.xlu0 %1350, %v1260
    %v1352 = vpop.permute.xlu0 %1351
    %1353 = vset.pattern.permute.xlu0 5
    %1354 = vperm.xlu0 %1353, %v1261
    %v1355 = vpop.permute.xlu0 %1354
    %1356 = vset.pattern.permute.xlu0 5
    %1357 = vperm.xlu0 %1356, %v1262
    %v1358 = vpop.permute.xlu0 %1357
    %vm1359 = vcmp.eq.s32.totalorder %v45, %v1265
    %vm1360 = vcmp.eq.s32.totalorder %v46, %v1265
    %vm1361 = vcmp.eq.s32.totalorder %v45, %v1268
    %vm1362 = vcmp.eq.s32.totalorder %v46, %v1268
    %vm1363 = vcmp.eq.s32.totalorder %v45, %v1271
    %vm1364 = vcmp.eq.s32.totalorder %v46, %v1271
    %vm1365 = vcmp.eq.s32.totalorder %v45, %v1274
    %vm1366 = vcmp.eq.s32.totalorder %v46, %v1274
    %vm1367 = vcmp.eq.s32.totalorder %v45, %v1277
    %vm1368 = vcmp.eq.s32.totalorder %v46, %v1277
    %vm1369 = vcmp.eq.s32.totalorder %v45, %v1280
    %vm1370 = vcmp.eq.s32.totalorder %v46, %v1280
    %vm1371 = vcmp.eq.s32.totalorder %v45, %v1283
    %vm1372 = vcmp.eq.s32.totalorder %v46, %v1283
    %vm1373 = vcmp.eq.s32.totalorder %v45, %v1286
    %vm1374 = vcmp.eq.s32.totalorder %v46, %v1286
    %vm1375 = vcmp.eq.s32.totalorder %v45, %v1289
    %vm1376 = vcmp.eq.s32.totalorder %v46, %v1289
    %vm1377 = vcmp.eq.s32.totalorder %v45, %v1292
    %vm1378 = vcmp.eq.s32.totalorder %v46, %v1292
    %vm1379 = vcmp.eq.s32.totalorder %v45, %v1295
    %vm1380 = vcmp.eq.s32.totalorder %v46, %v1295
    %vm1381 = vcmp.eq.s32.totalorder %v45, %v1298
    %vm1382 = vcmp.eq.s32.totalorder %v46, %v1298
    %vm1383 = vcmp.eq.s32.totalorder %v45, %v1301
    %vm1384 = vcmp.eq.s32.totalorder %v46, %v1301
    %vm1385 = vcmp.eq.s32.totalorder %v45, %v1304
    %vm1386 = vcmp.eq.s32.totalorder %v46, %v1304
    %vm1387 = vcmp.eq.s32.totalorder %v45, %v1307
    %vm1388 = vcmp.eq.s32.totalorder %v46, %v1307
    %vm1389 = vcmp.eq.s32.totalorder %v45, %v1310
    %vm1390 = vcmp.eq.s32.totalorder %v46, %v1310
    %vm1391 = vcmp.eq.s32.totalorder %v45, %v1313
    %vm1392 = vcmp.eq.s32.totalorder %v46, %v1313
    %vm1393 = vcmp.eq.s32.totalorder %v45, %v1316
    %vm1394 = vcmp.eq.s32.totalorder %v46, %v1316
    %vm1395 = vcmp.eq.s32.totalorder %v45, %v1319
    %vm1396 = vcmp.eq.s32.totalorder %v46, %v1319
    %vm1397 = vcmp.eq.s32.totalorder %v45, %v1322
    %vm1398 = vcmp.eq.s32.totalorder %v46, %v1322
    %vm1399 = vcmp.eq.s32.totalorder %v45, %v1325
    %vm1400 = vcmp.eq.s32.totalorder %v46, %v1325
    %vm1401 = vcmp.eq.s32.totalorder %v45, %v1328
    %vm1402 = vcmp.eq.s32.totalorder %v46, %v1328
    %vm1403 = vcmp.eq.s32.totalorder %v45, %v1331
    %vm1404 = vcmp.eq.s32.totalorder %v46, %v1331
    %vm1405 = vcmp.eq.s32.totalorder %v45, %v1334
    %vm1406 = vcmp.eq.s32.totalorder %v46, %v1334
    %vm1407 = vcmp.eq.s32.totalorder %v45, %v1337
    %vm1408 = vcmp.eq.s32.totalorder %v46, %v1337
    %vm1409 = vcmp.eq.s32.totalorder %v45, %v1340
    %vm1410 = vcmp.eq.s32.totalorder %v46, %v1340
    %vm1411 = vcmp.eq.s32.totalorder %v45, %v1343
    %vm1412 = vcmp.eq.s32.totalorder %v46, %v1343
    %vm1413 = vcmp.eq.s32.totalorder %v45, %v1346
    %vm1414 = vcmp.eq.s32.totalorder %v46, %v1346
    %vm1415 = vcmp.eq.s32.totalorder %v45, %v1349
    %vm1416 = vcmp.eq.s32.totalorder %v46, %v1349
    %vm1417 = vcmp.eq.s32.totalorder %v45, %v1352
    %vm1418 = vcmp.eq.s32.totalorder %v46, %v1352
    %vm1419 = vcmp.eq.s32.totalorder %v45, %v1355
    %vm1420 = vcmp.eq.s32.totalorder %v46, %v1355
    %vm1421 = vcmp.eq.s32.totalorder %v45, %v1358
    %vm1422 = vcmp.eq.s32.totalorder %v46, %v1358
    %vm1423 = vmor %vm1167, %vm1359
    %vm1424 = vmor %vm1168, %vm1360
    %vm1425 = vmor %vm1169, %vm1361
    %vm1426 = vmor %vm1170, %vm1362
    %vm1427 = vmor %vm1171, %vm1363
    %vm1428 = vmor %vm1172, %vm1364
    %vm1429 = vmor %vm1173, %vm1365
    %vm1430 = vmor %vm1174, %vm1366
    %vm1431 = vmor %vm1175, %vm1367
    %vm1432 = vmor %vm1176, %vm1368
    %vm1433 = vmor %vm1177, %vm1369
    %vm1434 = vmor %vm1178, %vm1370
    %vm1435 = vmor %vm1179, %vm1371
    %vm1436 = vmor %vm1180, %vm1372
    %vm1437 = vmor %vm1181, %vm1373
    %vm1438 = vmor %vm1182, %vm1374
    %vm1439 = vmor %vm1183, %vm1375
    %vm1440 = vmor %vm1184, %vm1376
    %vm1441 = vmor %vm1185, %vm1377
    %vm1442 = vmor %vm1186, %vm1378
    %vm1443 = vmor %vm1187, %vm1379
    %vm1444 = vmor %vm1188, %vm1380
    %vm1445 = vmor %vm1189, %vm1381
    %vm1446 = vmor %vm1190, %vm1382
    %vm1447 = vmor %vm1191, %vm1383
    %vm1448 = vmor %vm1192, %vm1384
    %vm1449 = vmor %vm1193, %vm1385
    %vm1450 = vmor %vm1194, %vm1386
    %vm1451 = vmor %vm1195, %vm1387
    %vm1452 = vmor %vm1196, %vm1388
    %vm1453 = vmor %vm1197, %vm1389
    %vm1454 = vmor %vm1198, %vm1390
    %vm1455 = vmor %vm1199, %vm1391
    %vm1456 = vmor %vm1200, %vm1392
    %vm1457 = vmor %vm1201, %vm1393
    %vm1458 = vmor %vm1202, %vm1394
    %vm1459 = vmor %vm1203, %vm1395
    %vm1460 = vmor %vm1204, %vm1396
    %vm1461 = vmor %vm1205, %vm1397
    %vm1462 = vmor %vm1206, %vm1398
    %vm1463 = vmor %vm1207, %vm1399
    %vm1464 = vmor %vm1208, %vm1400
    %vm1465 = vmor %vm1209, %vm1401
    %vm1466 = vmor %vm1210, %vm1402
    %vm1467 = vmor %vm1211, %vm1403
    %vm1468 = vmor %vm1212, %vm1404
    %vm1469 = vmor %vm1213, %vm1405
    %vm1470 = vmor %vm1214, %vm1406
    %vm1471 = vmor %vm1215, %vm1407
    %vm1472 = vmor %vm1216, %vm1408
    %vm1473 = vmor %vm1217, %vm1409
    %vm1474 = vmor %vm1218, %vm1410
    %vm1475 = vmor %vm1219, %vm1411
    %vm1476 = vmor %vm1220, %vm1412
    %vm1477 = vmor %vm1221, %vm1413
    %vm1478 = vmor %vm1222, %vm1414
    %vm1479 = vmor %vm1223, %vm1415
    %vm1480 = vmor %vm1224, %vm1416
    %vm1481 = vmor %vm1225, %vm1417
    %vm1482 = vmor %vm1226, %vm1418
    %vm1483 = vmor %vm1227, %vm1419
    %vm1484 = vmor %vm1228, %vm1420
    %vm1485 = vmor %vm1229, %vm1421
    %vm1486 = vmor %vm1230, %vm1422
    %v1487 = vsel %vm1423, 1.0, 0.0
    %v1488 = vsel %vm1424, 1.0, 0.0
    %v1489 = vsel %vm1425, 1.0, 0.0
    %v1490 = vsel %vm1426, 1.0, 0.0
    %v1491 = vsel %vm1427, 1.0, 0.0
    %v1492 = vsel %vm1428, 1.0, 0.0
    %v1493 = vsel %vm1429, 1.0, 0.0
    %v1494 = vsel %vm1430, 1.0, 0.0
    %v1495 = vsel %vm1431, 1.0, 0.0
    %v1496 = vsel %vm1432, 1.0, 0.0
    %v1497 = vsel %vm1433, 1.0, 0.0
    %v1498 = vsel %vm1434, 1.0, 0.0
    %v1499 = vsel %vm1435, 1.0, 0.0
    %v1500 = vsel %vm1436, 1.0, 0.0
    %v1501 = vsel %vm1437, 1.0, 0.0
    %v1502 = vsel %vm1438, 1.0, 0.0
    %v1503 = vsel %vm1439, 1.0, 0.0
    %v1504 = vsel %vm1440, 1.0, 0.0
    %v1505 = vsel %vm1441, 1.0, 0.0
    %v1506 = vsel %vm1442, 1.0, 0.0
    %v1507 = vsel %vm1443, 1.0, 0.0
    %v1508 = vsel %vm1444, 1.0, 0.0
    %v1509 = vsel %vm1445, 1.0, 0.0
    %v1510 = vsel %vm1446, 1.0, 0.0
    %v1511 = vsel %vm1447, 1.0, 0.0
    %v1512 = vsel %vm1448, 1.0, 0.0
    %v1513 = vsel %vm1449, 1.0, 0.0
    %v1514 = vsel %vm1450, 1.0, 0.0
    %v1515 = vsel %vm1451, 1.0, 0.0
    %v1516 = vsel %vm1452, 1.0, 0.0
    %v1517 = vsel %vm1453, 1.0, 0.0
    %v1518 = vsel %vm1454, 1.0, 0.0
    %v1519 = vsel %vm1455, 1.0, 0.0
    %v1520 = vsel %vm1456, 1.0, 0.0
    %v1521 = vsel %vm1457, 1.0, 0.0
    %v1522 = vsel %vm1458, 1.0, 0.0
    %v1523 = vsel %vm1459, 1.0, 0.0
    %v1524 = vsel %vm1460, 1.0, 0.0
    %v1525 = vsel %vm1461, 1.0, 0.0
    %v1526 = vsel %vm1462, 1.0, 0.0
    %v1527 = vsel %vm1463, 1.0, 0.0
    %v1528 = vsel %vm1464, 1.0, 0.0
    %v1529 = vsel %vm1465, 1.0, 0.0
    %v1530 = vsel %vm1466, 1.0, 0.0
    %v1531 = vsel %vm1467, 1.0, 0.0
    %v1532 = vsel %vm1468, 1.0, 0.0
    %v1533 = vsel %vm1469, 1.0, 0.0
    %v1534 = vsel %vm1470, 1.0, 0.0
    %v1535 = vsel %vm1471, 1.0, 0.0
    %v1536 = vsel %vm1472, 1.0, 0.0
    %v1537 = vsel %vm1473, 1.0, 0.0
    %v1538 = vsel %vm1474, 1.0, 0.0
    %v1539 = vsel %vm1475, 1.0, 0.0
    %v1540 = vsel %vm1476, 1.0, 0.0
    %v1541 = vsel %vm1477, 1.0, 0.0
    %v1542 = vsel %vm1478, 1.0, 0.0
    %v1543 = vsel %vm1479, 1.0, 0.0
    %v1544 = vsel %vm1480, 1.0, 0.0
    %v1545 = vsel %vm1481, 1.0, 0.0
    %v1546 = vsel %vm1482, 1.0, 0.0
    %v1547 = vsel %vm1483, 1.0, 0.0
    %v1548 = vsel %vm1484, 1.0, 0.0
    %v1549 = vsel %vm1485, 1.0, 0.0
    %v1550 = vsel %vm1486, 1.0, 0.0
    %v1551 = vld [vmem:[%s1] sm:$0xff]
    %v1552 = vld [vmem:[%s1 + $0x8] sm:$0xff]
    %v1553 = vld [vmem:[%s1 + $0x10] sm:$0xff]
    %v1554 = vld [vmem:[%s1 + $0x18] sm:$0xff]
    %v1555 = vld [vmem:[%s1 + $0x20] sm:$0xff]
    %v1556 = vld [vmem:[%s1 + $0x28] sm:$0xff]
    %v1557 = vld [vmem:[%s1 + $0x30] sm:$0xff]
    %v1558 = vld [vmem:[%s1 + $0x38] sm:$0xff]
    %v1559 = vld [vmem:[%s1 + $0x40] sm:$0xff]
    %v1560 = vld [vmem:[%s1 + $0x48] sm:$0xff]
    %v1561 = vld [vmem:[%s1 + $0x50] sm:$0xff]
    %v1562 = vld [vmem:[%s1 + $0x58] sm:$0xff]
    %v1563 = vld [vmem:[%s1 + $0x60] sm:$0xff]
    %v1564 = vld [vmem:[%s1 + $0x68] sm:$0xff]
    %v1565 = vld [vmem:[%s1 + $0x70] sm:$0xff]
    %v1566 = vld [vmem:[%s1 + $0x78] sm:$0xff]
    %v1567 = vld [vmem:[%s1 + $0x80] sm:$0xff]
    %v1568 = vld [vmem:[%s1 + $0x88] sm:$0xff]
    %v1569 = vld [vmem:[%s1 + $0x90] sm:$0xff]
    %v1570 = vld [vmem:[%s1 + $0x98] sm:$0xff]
    %v1571 = vld [vmem:[%s1 + $0xa0] sm:$0xff]
    %v1572 = vld [vmem:[%s1 + $0xa8] sm:$0xff]
    %v1573 = vld [vmem:[%s1 + $0xb0] sm:$0xff]
    %v1574 = vld [vmem:[%s1 + $0xb8] sm:$0xff]
    %v1575 = vld [vmem:[%s1 + $0xc0] sm:$0xff]
    %v1576 = vld [vmem:[%s1 + $0xc8] sm:$0xff]
    %v1577 = vld [vmem:[%s1 + $0xd0] sm:$0xff]
    %v1578 = vld [vmem:[%s1 + $0xd8] sm:$0xff]
    %v1579 = vld [vmem:[%s1 + $0xe0] sm:$0xff]
    %v1580 = vld [vmem:[%s1 + $0xe8] sm:$0xff]
    %v1581 = vld [vmem:[%s1 + $0xf0] sm:$0xff]
    %v1582 = vld [vmem:[%s1 + $0xf8] sm:$0xff]
    %1583 = vmatprep.subr.mxu0 0.0
    %1584 = vmatpush1.msra.mxu0 %v1551
    %1585 = vmatprep.subr.mxu0 0.0
    %1586 = vmatpush1.msra.mxu0 %v1552
    %1587 = vmatprep.subr.mxu0 0.0
    %1588 = vmatpush1.msra.mxu0 %v1553
    %1589 = vmatprep.subr.mxu0 0.0
    %1590 = vmatpush1.msra.mxu0 %v1554
    %1591 = vmatprep.subr.mxu0 0.0
    %1592 = vmatpush1.msra.mxu0 %v1555
    %1593 = vmatprep.subr.mxu0 0.0
    %1594 = vmatpush1.msra.mxu0 %v1556
    %1595 = vmatprep.subr.mxu0 0.0
    %1596 = vmatpush1.msra.mxu0 %v1557
    %1597 = vmatprep.subr.mxu0 0.0
    %1598 = vmatpush1.msra.mxu0 %v1558
    %1599 = vmatprep.subr.mxu0 0.0
    %1600 = vmatpush1.msra.mxu0 %v1559
    %1601 = vmatprep.subr.mxu0 0.0
    %1602 = vmatpush1.msra.mxu0 %v1560
    %1603 = vmatprep.subr.mxu0 0.0
    %1604 = vmatpush1.msra.mxu0 %v1561
    %1605 = vmatprep.subr.mxu0 0.0
    %1606 = vmatpush1.msra.mxu0 %v1562
    %1607 = vmatprep.subr.mxu0 0.0
    %1608 = vmatpush1.msra.mxu0 %v1563
    %1609 = vmatprep.subr.mxu0 0.0
    %1610 = vmatpush1.msra.mxu0 %v1564
    %1611 = vmatprep.subr.mxu0 0.0
    %1612 = vmatpush1.msra.mxu0 %v1565
    %1613 = vmatprep.subr.mxu0 0.0
    %1614 = vmatpush1.msra.mxu0 %v1566
    %1615 = vmatprep.subr.mxu0 0.0
    %1616 = vmatpush1.msra.mxu0 %v1567
    %1617 = vmatprep.subr.mxu0 0.0
    %1618 = vmatpush1.msra.mxu0 %v1568
    %1619 = vmatprep.subr.mxu0 0.0
    %1620 = vmatpush1.msra.mxu0 %v1569
    %1621 = vmatprep.subr.mxu0 0.0
    %1622 = vmatpush1.msra.mxu0 %v1570
    %1623 = vmatprep.subr.mxu0 0.0
    %1624 = vmatpush1.msra.mxu0 %v1571
    %1625 = vmatprep.subr.mxu0 0.0
    %1626 = vmatpush1.msra.mxu0 %v1572
    %1627 = vmatprep.subr.mxu0 0.0
    %1628 = vmatpush1.msra.mxu0 %v1573
    %1629 = vmatprep.subr.mxu0 0.0
    %1630 = vmatpush1.msra.mxu0 %v1574
    %1631 = vmatprep.subr.mxu0 0.0
    %1632 = vmatpush1.msra.mxu0 %v1575
    %1633 = vmatprep.subr.mxu0 0.0
    %1634 = vmatpush1.msra.mxu0 %v1576
    %1635 = vmatprep.subr.mxu0 0.0
    %1636 = vmatpush1.msra.mxu0 %v1577
    %1637 = vmatprep.subr.mxu0 0.0
    %1638 = vmatpush1.msra.mxu0 %v1578
    %1639 = vmatprep.subr.mxu0 0.0
    %1640 = vmatpush1.msra.mxu0 %v1579
    %1641 = vmatprep.subr.mxu0 0.0
    %1642 = vmatpush1.msra.mxu0 %v1580
    %1643 = vmatprep.subr.mxu0 0.0
    %1644 = vmatpush1.msra.mxu0 %v1581
    %1645 = vmatprep.subr.mxu0 0.0
    %1646 = vmatpush1.msra.mxu0 %v1582
    %1647 = vmatprep.mubr.f32.mxu0 %v1488
    %1648 = vmatmul.mubr.f32.gmra.mrb[0].mxu0 %v1487
    %v1649 = vpop.f32.mrb[0].mxu0
    %v1650 = vadd.f32 0.0, %v1649
    %v1651 = vpop.f32.mrb[0].mxu0
    %1652 = vmatprep.mubr.f32.mxu0 %v1490
    %1653 = vmatmul.mubr.f32.gmra.mrb[0].mxu0 %v1489
    %v1654 = vpop.f32.mrb[0].mxu0
    %v1655 = vadd.f32 0.0, %v1654
    %v1656 = vpop.f32.mrb[0].mxu0
    %1657 = vmatprep.mubr.f32.mxu0 %v1492
    %1658 = vmatmul.mubr.f32.gmra.mrb[0].mxu0 %v1491
    %v1659 = vpop.f32.mrb[0].mxu0
    %v1660 = vadd.f32 0.0, %v1659
    %v1661 = vpop.f32.mrb[0].mxu0
    %1662 = vmatprep.mubr.f32.mxu0 %v1494
    %1663 = vmatmul.mubr.f32.gmra.mrb[0].mxu0 %v1493
    %v1664 = vpop.f32.mrb[0].mxu0
    %v1665 = vadd.f32 0.0, %v1664
    %v1666 = vpop.f32.mrb[0].mxu0
    %1667 = vmatprep.mubr.f32.mxu0 %v1496
    %1668 = vmatmul.mubr.f32.gmra.mrb[0].mxu0 %v1495
    %v1669 = vpop.f32.mrb[0].mxu0
    %v1670 = vadd.f32 0.0, %v1669
    %v1671 = vpop.f32.mrb[0].mxu0
    %1672 = vmatprep.mubr.f32.mxu0 %v1498
    %1673 = vmatmul.mubr.f32.gmra.mrb[0].mxu0 %v1497
    %v1674 = vpop.f32.mrb[0].mxu0
    %v1675 = vadd.f32 0.0, %v1674
    %v1676 = vpop.f32.mrb[0].mxu0
    %1677 = vmatprep.mubr.f32.mxu0 %v1500
    %1678 = vmatmul.mubr.f32.gmra.mrb[0].mxu0 %v1499
    %v1679 = vpop.f32.mrb[0].mxu0
    %v1680 = vadd.f32 0.0, %v1679
    %v1681 = vpop.f32.mrb[0].mxu0
    %1682 = vmatprep.mubr.f32.mxu0 %v1502
    %1683 = vmatmul.mubr.f32.gmra.mrb[0].mxu0 %v1501
    %v1684 = vpop.f32.mrb[0].mxu0
    %v1685 = vadd.f32 0.0, %v1684
    %v1686 = vpop.f32.mrb[0].mxu0
    %1687 = vmatprep.mubr.f32.mxu0 %v1504
    %1688 = vmatmul.mubr.f32.gmra.mrb[0].mxu0 %v1503
    %v1689 = vpop.f32.mrb[0].mxu0
    %v1690 = vadd.f32 0.0, %v1689
    %v1691 = vpop.f32.mrb[0].mxu0
    %1692 = vmatprep.mubr.f32.mxu0 %v1506
    %1693 = vmatmul.mubr.f32.gmra.mrb[0].mxu0 %v1505
    %v1694 = vpop.f32.mrb[0].mxu0
    %v1695 = vadd.f32 0.0, %v1694
    %v1696 = vpop.f32.mrb[0].mxu0
    %1697 = vmatprep.mubr.f32.mxu0 %v1508
    %1698 = vmatmul.mubr.f32.gmra.mrb[0].mxu0 %v1507
    %v1699 = vpop.f32.mrb[0].mxu0
    %v1700 = vadd.f32 0.0, %v1699
    %v1701 = vpop.f32.mrb[0].mxu0
    %1702 = vmatprep.mubr.f32.mxu0 %v1510
    %1703 = vmatmul.mubr.f32.gmra.mrb[0].mxu0 %v1509
    %v1704 = vpop.f32.mrb[0].mxu0
    %v1705 = vadd.f32 0.0, %v1704
    %v1706 = vpop.f32.mrb[0].mxu0
    %1707 = vmatprep.mubr.f32.mxu0 %v1512
    %1708 = vmatmul.mubr.f32.gmra.mrb[0].mxu0 %v1511
    %v1709 = vpop.f32.mrb[0].mxu0
    %v1710 = vadd.f32 0.0, %v1709
    %v1711 = vpop.f32.mrb[0].mxu0
    %1712 = vmatprep.mubr.f32.mxu0 %v1514
    %1713 = vmatmul.mubr.f32.gmra.mrb[0].mxu0 %v1513
    %v1714 = vpop.f32.mrb[0].mxu0
    %v1715 = vadd.f32 0.0, %v1714
    %v1716 = vpop.f32.mrb[0].mxu0
    %1717 = vmatprep.mubr.f32.mxu0 %v1516
    %1718 = vmatmul.mubr.f32.gmra.mrb[0].mxu0 %v1515
    %v1719 = vpop.f32.mrb[0].mxu0
    %v1720 = vadd.f32 0.0, %v1719
    %v1721 = vpop.f32.mrb[0].mxu0
    %1722 = vmatprep.mubr.f32.mxu0 %v1518
    %1723 = vmatmul.mubr.f32.gmra.mrb[0].mxu0 %v1517
    %v1724 = vpop.f32.mrb[0].mxu0
    %v1725 = vadd.f32 0.0, %v1724
    %v1726 = vpop.f32.mrb[0].mxu0
    %1727 = vmatprep.mubr.f32.mxu0 %v1520
    %1728 = vmatmul.mubr.f32.gmra.mrb[0].mxu0 %v1519
    %v1729 = vpop.f32.mrb[0].mxu0
    %v1730 = vadd.f32 0.0, %v1729
    %v1731 = vpop.f32.mrb[0].mxu0
    %1732 = vmatprep.mubr.f32.mxu0 %v1522
    %1733 = vmatmul.mubr.f32.gmra.mrb[0].mxu0 %v1521
    %v1734 = vpop.f32.mrb[0].mxu0
    %v1735 = vadd.f32 0.0, %v1734
    %v1736 = vpop.f32.mrb[0].mxu0
    %1737 = vmatprep.mubr.f32.mxu0 %v1524
    %1738 = vmatmul.mubr.f32.gmra.mrb[0].mxu0 %v1523
    %v1739 = vpop.f32.mrb[0].mxu0
    %v1740 = vadd.f32 0.0, %v1739
    %v1741 = vpop.f32.mrb[0].mxu0
    %1742 = vmatprep.mubr.f32.mxu0 %v1526
    %1743 = vmatmul.mubr.f32.gmra.mrb[0].mxu0 %v1525
    %v1744 = vpop.f32.mrb[0].mxu0
    %v1745 = vadd.f32 0.0, %v1744
    %v1746 = vpop.f32.mrb[0].mxu0
    %1747 = vmatprep.mubr.f32.mxu0 %v1528
    %1748 = vmatmul.mubr.f32.gmra.mrb[0].mxu0 %v1527
    %v1749 = vpop.f32.mrb[0].mxu0
    %v1750 = vadd.f32 0.0, %v1749
    %v1751 = vpop.f32.mrb[0].mxu0
    %1752 = vmatprep.mubr.f32.mxu0 %v1530
    %1753 = vmatmul.mubr.f32.gmra.mrb[0].mxu0 %v1529
    %v1754 = vpop.f32.mrb[0].mxu0
    %v1755 = vadd.f32 0.0, %v1754
    %v1756 = vpop.f32.mrb[0].mxu0
    %1757 = vmatprep.mubr.f32.mxu0 %v1532
    %1758 = vmatmul.mubr.f32.gmra.mrb[0].mxu0 %v1531
    %v1759 = vpop.f32.mrb[0].mxu0
    %v1760 = vadd.f32 0.0, %v1759
    %v1761 = vpop.f32.mrb[0].mxu0
    %1762 = vmatprep.mubr.f32.mxu0 %v1534
    %1763 = vmatmul.mubr.f32.gmra.mrb[0].mxu0 %v1533
    %v1764 = vpop.f32.mrb[0].mxu0
    %v1765 = vadd.f32 0.0, %v1764
    %v1766 = vpop.f32.mrb[0].mxu0
    %1767 = vmatprep.mubr.f32.mxu0 %v1536
    %1768 = vmatmul.mubr.f32.gmra.mrb[0].mxu0 %v1535
    %v1769 = vpop.f32.mrb[0].mxu0
    %v1770 = vadd.f32 0.0, %v1769
    %v1771 = vpop.f32.mrb[0].mxu0
    %1772 = vmatprep.mubr.f32.mxu0 %v1538
    %1773 = vmatmul.mubr.f32.gmra.mrb[0].mxu0 %v1537
    %v1774 = vpop.f32.mrb[0].mxu0
    %v1775 = vadd.f32 0.0, %v1774
    %v1776 = vpop.f32.mrb[0].mxu0
    %1777 = vmatprep.mubr.f32.mxu0 %v1540
    %1778 = vmatmul.mubr.f32.gmra.mrb[0].mxu0 %v1539
    %v1779 = vpop.f32.mrb[0].mxu0
    %v1780 = vadd.f32 0.0, %v1779
    %v1781 = vpop.f32.mrb[0].mxu0
    %1782 = vmatprep.mubr.f32.mxu0 %v1542
    %1783 = vmatmul.mubr.f32.gmra.mrb[0].mxu0 %v1541
    %v1784 = vpop.f32.mrb[0].mxu0
    %v1785 = vadd.f32 0.0, %v1784
    %v1786 = vpop.f32.mrb[0].mxu0
    %1787 = vmatprep.mubr.f32.mxu0 %v1544
    %1788 = vmatmul.mubr.f32.gmra.mrb[0].mxu0 %v1543
    %v1789 = vpop.f32.mrb[0].mxu0
    %v1790 = vadd.f32 0.0, %v1789
    %v1791 = vpop.f32.mrb[0].mxu0
    %1792 = vmatprep.mubr.f32.mxu0 %v1546
    %1793 = vmatmul.mubr.f32.gmra.mrb[0].mxu0 %v1545
    %v1794 = vpop.f32.mrb[0].mxu0
    %v1795 = vadd.f32 0.0, %v1794
    %v1796 = vpop.f32.mrb[0].mxu0
    %1797 = vmatprep.mubr.f32.mxu0 %v1548
    %1798 = vmatmul.mubr.f32.gmra.mrb[0].mxu0 %v1547
    %v1799 = vpop.f32.mrb[0].mxu0
    %v1800 = vadd.f32 0.0, %v1799
    %v1801 = vpop.f32.mrb[0].mxu0
    %1802 = vmatprep.mubr.f32.mxu0 %v1550
    %1803 = vmatmul.mubr.f32.gmra.mrb[0].mxu0 %v1549
    %v1804 = vpop.f32.mrb[0].mxu0
    %v1805 = vadd.f32 0.0, %v1804
    %v1806 = vpop.f32.mrb[0].mxu0
    %1807 = vdwg.mxu0
    %1808 = vst [vmem:[#allocation2] sm:$0xff] %v1650
    %1809 = vst [vmem:[#allocation2 + $0x8] sm:$0xff] %v1655
    %1810 = vst [vmem:[#allocation2 + $0x10] sm:$0xff] %v1660
    %1811 = vst [vmem:[#allocation2 + $0x18] sm:$0xff] %v1665
    %1812 = vst [vmem:[#allocation2 + $0x20] sm:$0xff] %v1670
    %1813 = vst [vmem:[#allocation2 + $0x28] sm:$0xff] %v1675
    %1814 = vst [vmem:[#allocation2 + $0x30] sm:$0xff] %v1680
    %1815 = vst [vmem:[#allocation2 + $0x38] sm:$0xff] %v1685
    %1816 = vst [vmem:[#allocation2 + $0x40] sm:$0xff] %v1690
    %1817 = vst [vmem:[#allocation2 + $0x48] sm:$0xff] %v1695
    %1818 = vst [vmem:[#allocation2 + $0x50] sm:$0xff] %v1700
    %1819 = vst [vmem:[#allocation2 + $0x58] sm:$0xff] %v1705
    %1820 = vst [vmem:[#allocation2 + $0x60] sm:$0xff] %v1710
    %1821 = vst [vmem:[#allocation2 + $0x68] sm:$0xff] %v1715
    %1822 = vst [vmem:[#allocation2 + $0x70] sm:$0xff] %v1720
    %1823 = vst [vmem:[#allocation2 + $0x78] sm:$0xff] %v1725
    %1824 = vst [vmem:[#allocation2 + $0x80] sm:$0xff] %v1730
    %1825 = vst [vmem:[#allocation2 + $0x88] sm:$0xff] %v1735
    %1826 = vst [vmem:[#allocation2 + $0x90] sm:$0xff] %v1740
    %1827 = vst [vmem:[#allocation2 + $0x98] sm:$0xff] %v1745
    %1828 = vst [vmem:[#allocation2 + $0xa0] sm:$0xff] %v1750
    %1829 = vst [vmem:[#allocation2 + $0xa8] sm:$0xff] %v1755
    %1830 = vst [vmem:[#allocation2 + $0xb0] sm:$0xff] %v1760
    %1831 = vst [vmem:[#allocation2 + $0xb8] sm:$0xff] %v1765
    %1832 = vst [vmem:[#allocation2 + $0xc0] sm:$0xff] %v1770
    %1833 = vst [vmem:[#allocation2 + $0xc8] sm:$0xff] %v1775
    %1834 = vst [vmem:[#allocation2 + $0xd0] sm:$0xff] %v1780
    %1835 = vst [vmem:[#allocation2 + $0xd8] sm:$0xff] %v1785
    %1836 = vst [vmem:[#allocation2 + $0xe0] sm:$0xff] %v1790
    %1837 = vst [vmem:[#allocation2 + $0xe8] sm:$0xff] %v1795
    %1838 = vst [vmem:[#allocation2 + $0xf0] sm:$0xff] %v1800
    %1839 = vst [vmem:[#allocation2 + $0xf8] sm:$0xff] %v1805
    // Predicated region
    $region10: #{tpu_custom_call.1} parent=1 // pred_check
      _
    $region11: #{tpu_custom_call.1} parent=1 // pred_check_branch
      %1841 = sbr.rel (0) target = $region13
    $region12: #{tpu_custom_call.1} parent=1 // pred_region
      %s1843 = ssub.s32 4096, 4096
      %1844 = vsyncadd [#allocation3], %s1843
      %s1845 = sshll.u32 [#allocation2], 4
      %s1846 = int_to_ptr.vmem [resolvable:$true] %s1845
      %1851 = dma.vmem_to_hbm [thread:$0]  %s1846, 4096, %s2, [#allocation3], 128, 128, 8
    $region13: #{tpu_custom_call.1} parent=1 // pred_fallthru
      _
    // Predicated region
    $region14: #{tpu_custom_call.1} parent=1 // pred_check
      _
    $region15: #{tpu_custom_call.1} parent=1 // pred_check_branch
      %1853 = sbr.rel (0) target = $region17
    $region16: #{tpu_custom_call.1} parent=1 // pred_region
      %1854 = dma.done [#allocation3], 4096
    $region17: #{tpu_custom_call.1} parent=1 // pred_fallthru
      _
    %1855 = vsyncpa [#allocation3], 1

</llo_original>
